<compile_context>
chip_gen: v7x
topology: tpu7x:2x2x1
jax: 0.10.0
libtpu: 0.0.40
codegen_flags: <defaults>
</compile_context>

<pallas_src>
import functools

import jax
import jax.numpy as jnp
from jax.experimental import pallas as pl
from jax.experimental.pallas import tpu as pltpu

DROPOUT_P = 0.2   # matches the PyTorch module's `dropout = 0.2`
N_EMBD = 384      # matches the PyTorch module's `n_embd = 384`


def _ff_kernel(x_ref, w1_ref, b1_ref, w2_ref, b2_ref, *rest, apply_mask: bool):
    if apply_mask:
        mask_ref, o_ref, acc_ref = rest
    else:
        mask_ref = None
        o_ref, acc_ref = rest

    j = pl.program_id(1)

    @pl.when(j == 0)
    def _():
        acc_ref[...] = jnp.zeros_like(acc_ref)

    # ---- Linear1 chunk -> ReLU -> Linear2 chunk, bf16 MXU / f32 accumulate ----
    x_bf = x_ref[...].astype(jnp.bfloat16)                       # (tm, C)
    h = jnp.dot(x_bf, w1_ref[...], preferred_element_type=jnp.float32)
    h = jnp.maximum(h + b1_ref[...], 0.0)                        # (tm, th)
    acc_ref[...] += jnp.dot(h.astype(jnp.bfloat16), w2_ref[...],
                            preferred_element_type=jnp.float32)  # (tm, C)

    @pl.when(j == pl.num_programs(1) - 1)
    def _():
        y = acc_ref[...] + b2_ref[...]
        if apply_mask:
            y = y * mask_ref[...]    # mask already scaled by 1/keep_prob
        o_ref[...] = y.astype(o_ref.dtype)


def _pick_row_tile(m: int, cap: int = 256) -> int:
    """Largest multiple of 8 dividing M, <= cap, preferring >=2 grid steps."""
    divisors = [t for t in range(8, min(cap, m) + 1, 8) if m % t == 0]
    assert divisors, "B*T must be a multiple of 8"
    with_two = [t for t in divisors if m // t >= 2]
    return max(with_two) if with_two else max(divisors)


def _pick_hidden_tile(h: int, cap: int = 512) -> int:
    """Largest multiple of 128 dividing H, <= cap."""
    best = 128
    for t in range(128, min(cap, h) + 1, 128):
        if h % t == 0:
            best = t
    return best


def feed_forward(x, w1, b1, w2, b2, *, training: bool = False,
                 dropout_p: float = DROPOUT_P, rng_key=None,
                 tm: int | None = None, th: int | None = None):
    """x: [B, T, C] f32. w1: [C, 4C], b1: [4C], w2: [4C, C], b2: [C]."""
    B, T, C = x.shape
    H = w1.shape[1]
    M = B * T
    assert C % 128 == 0 and H % 128 == 0, "feature dims must be lane-dense"
    assert M % 8 == 0, "B*T must be a multiple of 8"

    tm = tm if tm is not None else _pick_row_tile(M)
    th = th if th is not None else _pick_hidden_tile(H)
    assert M % tm == 0 and H % th == 0

    x2d = x.reshape(M, C)
    w1b = w1.astype(jnp.bfloat16)
    w2b = w2.astype(jnp.bfloat16)
    b1_2d = b1.reshape(1, H).astype(jnp.float32)
    b2_2d = b2.reshape(1, C).astype(jnp.float32)

    apply_mask = bool(training) and dropout_p > 0.0

    inputs = [x2d, w1b, b1_2d, w2b, b2_2d]
    in_specs = [
        pl.BlockSpec((tm, C), lambda i, j: (i, 0)),   # x row tile (constant over j)
        pl.BlockSpec((C, th), lambda i, j: (0, j)),   # W1 hidden chunk
        pl.BlockSpec((1, th), lambda i, j: (0, j)),   # b1 hidden chunk
        pl.BlockSpec((th, C), lambda i, j: (j, 0)),   # W2 hidden chunk
        pl.BlockSpec((1, C), lambda i, j: (0, 0)),    # b2 (resident)
    ]
    if apply_mask:
        keep = 1.0 - dropout_p
        if rng_key is None:
            rng_key = jax.random.PRNGKey(0)
        # Inverted-dropout mask, pre-scaled by 1/keep_prob (nn.Dropout semantics).
        mask = jax.random.bernoulli(rng_key, keep, (M, C)).astype(jnp.float32)
        mask = mask * (1.0 / keep)
        inputs.append(mask)
        in_specs.append(pl.BlockSpec((tm, C), lambda i, j: (i, 0)))

    grid = (M // tm, H // th)

    # Advisory cost estimate: 2 matmuls of 2*M*C*H flops; weights re-streamed per
    # row tile, x/out/mask streamed once.
    weight_bytes = (w1b.size + w2b.size) * 2 * (M // tm)
    io_bytes = (2 + (1 if apply_mask else 0)) * M * C * 4
    cost = pl.CostEstimate(flops=int(4 * M * C * H),
                           transcendentals=0,
                           bytes_accessed=int(weight_bytes + io_bytes))

    out2d = pl.pallas_call(
        functools.partial(_ff_kernel, apply_mask=apply_mask),
        out_shape=jax.ShapeDtypeStruct((M, C), x.dtype),
        grid_spec=pltpu.PrefetchScalarGridSpec(
            num_scalar_prefetch=0,
            grid=grid,
            in_specs=in_specs,
            out_specs=pl.BlockSpec((tm, C), lambda i, j: (i, 0)),
            scratch_shapes=[pltpu.VMEM((tm, C), jnp.float32)],   # f32 accumulator
        ),
        compiler_params=pltpu.CompilerParams(
            dimension_semantics=("parallel", "arbitrary"),
            vmem_limit_bytes=64 * 1024 * 1024,   # safe on v5e/v6e/v7x; raises the
                                                 # default scoped cap well above need
        ),
        cost_estimate=cost,
    )(*inputs)

    return out2d.reshape(B, T, C)


def _init_params(key, n_embd):
    """Deterministic init mimicking PyTorch nn.Linear (uniform +-1/sqrt(fan_in))."""
    hidden = 4 * n_embd
    k1, k2, k3, k4 = jax.random.split(key, 4)
    lim1 = 1.0 / (n_embd ** 0.5)
    lim2 = 1.0 / (hidden ** 0.5)
    w1 = jax.random.uniform(k1, (n_embd, hidden), jnp.float32, -lim1, lim1)
    b1 = jax.random.uniform(k2, (hidden,), jnp.float32, -lim1, lim1)
    w2 = jax.random.uniform(k3, (hidden, n_embd), jnp.float32, -lim2, lim2)
    b2 = jax.random.uniform(k4, (n_embd,), jnp.float32, -lim2, lim2)
    return w1, b1, w2, b2


if __name__ == "__main__":
    # Small shapes consistent with the module: batch=2, seq=8, n_embd=384.
    B, T, C = 2, 8, N_EMBD
    key = jax.random.PRNGKey(0)
    kx, kp, kd = jax.random.split(key, 3)
    x = jax.random.normal(kx, (B, T, C), dtype=jnp.float32)
    w1, b1, w2, b2 = _init_params(kp, C)

    # ---- eval mode (Dropout = identity) ----
    out = jax.block_until_ready(feed_forward(x, w1, b1, w2, b2, training=False))

    # Pure-JAX reference with the same bf16-matmul / f32-accumulate recipe.
    xb = x.reshape(-1, C).astype(jnp.bfloat16)
    h_ref = jnp.dot(xb, w1.astype(jnp.bfloat16),
                    preferred_element_type=jnp.float32) + b1
    h_ref = jnp.maximum(h_ref, 0.0)
    ref2d = jnp.dot(h_ref.astype(jnp.bfloat16), w2.astype(jnp.bfloat16),
                    preferred_element_type=jnp.float32) + b2
    ref = ref2d.reshape(B, T, C)

    assert out.shape == (B, T, C)
    assert jnp.allclose(out, ref, atol=5e-2, rtol=5e-2), "eval mismatch vs reference"

    # ---- training mode (dropout p=0.2) ----
    out_train = jax.block_until_ready(
        feed_forward(x, w1, b1, w2, b2, training=True, rng_key=kd))
    keep = 1.0 - DROPOUT_P
    mask = jax.random.bernoulli(kd, keep, (B * T, C)).astype(jnp.float32) / keep
    ref_train = (ref2d * mask).reshape(B, T, C)
    assert out_train.shape == (B, T, C)
    assert jnp.allclose(out_train, ref_train, atol=5e-2, rtol=5e-2), "train mismatch"

    print("KERNEL_OK")
</pallas_src>

<mosaic_0001>
module attributes {stable_mosaic.version = 11 : i64} {
  func.func @_ff_kernel(%arg0: i32, %arg1: i32, %arg2: memref<8x384xf32, #tpu.memory_space<vmem>>, %arg3: memref<384x512xbf16, #tpu.memory_space<vmem>>, %arg4: memref<1x512xf32, #tpu.memory_space<vmem>>, %arg5: memref<512x384xbf16, #tpu.memory_space<vmem>>, %arg6: memref<1x384xf32, #tpu.memory_space<vmem>>, %arg7: memref<8x384xf32, #tpu.memory_space<vmem>>, %arg8: memref<8x384xf32, #tpu.memory_space<vmem>>) attributes {dimension_semantics = [#tpu.dimension_semantics<parallel>, #tpu.dimension_semantics<arbitrary>], iteration_bounds = array<i64: 2, 3>, scalar_prefetch = 0 : i64, scratch_operands = 1 : i64, tpu.core_type = #tpu.core_type<tc>, window_params = [{transform_indices = @transform_0, window_bounds = array<i64: 8, 384>}, {transform_indices = @transform_1, window_bounds = array<i64: 384, 512>}, {transform_indices = @transform_2, window_bounds = array<i64: 1, 512>}, {transform_indices = @transform_3, window_bounds = array<i64: 512, 384>}, {pipeline_mode = #tpu.pipeline_mode<synchronous>, transform_indices = @transform_4, window_bounds = array<i64: 1, 384>}, {transform_indices = @transform_5, window_bounds = array<i64: 8, 384>}]} {
    %c0_i32 = arith.constant 0 : i32
    %0 = arith.cmpi eq, %arg1, %c0_i32 : i32
    %1 = arith.extui %0 : i1 to i32
    %c0_i32_0 = arith.constant 0 : i32
    %2 = arith.cmpi ne, %1, %c0_i32_0 : i32
    scf.if %2 {
      %cst_15 = arith.constant 0.000000e+00 : f32
      %21 = vector.broadcast %cst_15 : f32 to vector<8x384xf32>
      %c0_16 = arith.constant 0 : index
      %c0_17 = arith.constant 0 : index
      %22 = vector.load %arg8[%c0_16, %c0_17] : memref<8x384xf32, #tpu.memory_space<vmem>>, vector<8x384xf32>
      tpu.vector_store %arg8[%c0_16, %c0_17], %21 {strides = array<i32>} : memref<8x384xf32, #tpu.memory_space<vmem>>, vector<8x384xf32>,
    } else {
    }
    %c0 = arith.constant 0 : index
    %c0_1 = arith.constant 0 : index
    %3 = vector.load %arg2[%c0, %c0_1] : memref<8x384xf32, #tpu.memory_space<vmem>>, vector<8x384xf32>
    %4 = arith.truncf %3 : vector<8x384xf32> to vector<8x384xbf16>
    %c0_2 = arith.constant 0 : index
    %c0_3 = arith.constant 0 : index
    %5 = vector.load %arg3[%c0_2, %c0_3] : memref<384x512xbf16, #tpu.memory_space<vmem>>, vector<384x512xbf16>
    %cst = arith.constant dense<0.000000e+00> : vector<8x512xf32>
    %6 = tpu.matmul %4, %5, %cst {dimension_numbers = #tpu.dot_dimension_numbers<[1], [0], [0], [1], [0, 0, 1, 1], [], []>} : vector<8x384xbf16>, vector<384x512xbf16>, vector<8x512xf32> -> vector<8x512xf32>
    %c0_4 = arith.constant 0 : index
    %c0_5 = arith.constant 0 : index
    %7 = vector.load %arg4[%c0_4, %c0_5] : memref<1x512xf32, #tpu.memory_space<vmem>>, vector<1x512xf32>
    %8 = vector.broadcast %7 : vector<1x512xf32> to vector<8x512xf32>
    %9 = arith.addf %6, %8 : vector<8x512xf32>
    %cst_6 = arith.constant 0.000000e+00 : f32
    %10 = vector.broadcast %cst_6 : f32 to vector<8x512xf32>
    %11 = arith.maximumf %9, %10 : vector<8x512xf32>
    %c0_7 = arith.constant 0 : index
    %c0_8 = arith.constant 0 : index
    %12 = vector.load %arg8[%c0_7, %c0_8] : memref<8x384xf32, #tpu.memory_space<vmem>>, vector<8x384xf32>
    %13 = arith.truncf %11 : vector<8x512xf32> to vector<8x512xbf16>
    %c0_9 = arith.constant 0 : index
    %c0_10 = arith.constant 0 : index
    %14 = vector.load %arg5[%c0_9, %c0_10] : memref<512x384xbf16, #tpu.memory_space<vmem>>, vector<512x384xbf16>
    %cst_11 = arith.constant dense<0.000000e+00> : vector<8x384xf32>
    %15 = tpu.matmul %13, %14, %cst_11 {dimension_numbers = #tpu.dot_dimension_numbers<[1], [0], [0], [1], [0, 0, 1, 1], [], []>} : vector<8x512xbf16>, vector<512x384xbf16>, vector<8x384xf32> -> vector<8x384xf32>
    %16 = arith.addf %12, %15 : vector<8x384xf32>
    %c0_12 = arith.constant 0 : index
    %c0_13 = arith.constant 0 : index
    %17 = vector.load %arg8[%c0_12, %c0_13] : memref<8x384xf32, #tpu.memory_space<vmem>>, vector<8x384xf32>
    tpu.vector_store %arg8[%c0_12, %c0_13], %16 {strides = array<i32>} : memref<8x384xf32, #tpu.memory_space<vmem>>, vector<8x384xf32>,
    %c2_i32 = arith.constant 2 : i32
    %18 = arith.cmpi eq, %arg1, %c2_i32 : i32
    %19 = arith.extui %18 : i1 to i32
    %c0_i32_14 = arith.constant 0 : i32
    %20 = arith.cmpi ne, %19, %c0_i32_14 : i32
    scf.if %20 {
      %c0_15 = arith.constant 0 : index
      %c0_16 = arith.constant 0 : index
      %21 = vector.load %arg8[%c0_15, %c0_16] : memref<8x384xf32, #tpu.memory_space<vmem>>, vector<8x384xf32>
      %c0_17 = arith.constant 0 : index
      %c0_18 = arith.constant 0 : index
      %22 = vector.load %arg6[%c0_17, %c0_18] : memref<1x384xf32, #tpu.memory_space<vmem>>, vector<1x384xf32>
      %23 = vector.broadcast %22 : vector<1x384xf32> to vector<8x384xf32>
      %24 = arith.addf %21, %23 : vector<8x384xf32>
      %c0_19 = arith.constant 0 : index
      %c0_20 = arith.constant 0 : index
      %25 = vector.load %arg7[%c0_19, %c0_20] : memref<8x384xf32, #tpu.memory_space<vmem>>, vector<8x384xf32>
      tpu.vector_store %arg7[%c0_19, %c0_20], %24 {strides = array<i32>} : memref<8x384xf32, #tpu.memory_space<vmem>>, vector<8x384xf32>,
    } else {
    }
    return
  }
  func.func @transform_0(%arg0: i32, %arg1: i32) -> (i32, i32) {
    %c0_i32 = arith.constant 0 : i32
    %c0_i32_0 = arith.constant 0 : i32
    return %arg0, %c0_i32 : i32, i32
  }
  func.func @transform_1(%arg0: i32, %arg1: i32) -> (i32, i32) {
    %c0_i32 = arith.constant 0 : i32
    %c0_i32_0 = arith.constant 0 : i32
    return %c0_i32, %arg1 : i32, i32
  }
  func.func @transform_2(%arg0: i32, %arg1: i32) -> (i32, i32) {
    %c0_i32 = arith.constant 0 : i32
    %c0_i32_0 = arith.constant 0 : i32
    return %c0_i32, %arg1 : i32, i32
  }
  func.func @transform_3(%arg0: i32, %arg1: i32) -> (i32, i32) {
    %c0_i32 = arith.constant 0 : i32
    %c0_i32_0 = arith.constant 0 : i32
    return %arg1, %c0_i32 : i32, i32
  }
  func.func @transform_4(%arg0: i32, %arg1: i32) -> (i32, i32) {
    %c0_i32 = arith.constant 0 : i32
    %c0_i32_0 = arith.constant 0 : i32
    %c0_i32_1 = arith.constant 0 : i32
    return %c0_i32, %c0_i32_0 : i32, i32
  }
  func.func @transform_5(%arg0: i32, %arg1: i32) -> (i32, i32) {
    %c0_i32 = arith.constant 0 : i32
    %c0_i32_0 = arith.constant 0 : i32
    return %arg0, %c0_i32 : i32, i32
  }
}

</mosaic_0001>

<llo_original>
// kernel: tpu_custom_call.1
$region0: #{tpu_custom_call.1}
  #allocation0 [shape = 'u32[]', space=smem, size = 0x4, offset = 0x4, fixed_abs, tag = 'smem constant byte address 0x4 - core index']
  #allocation1 [shape = 'u32[144,128]{1,0:T(1,128)}', space=vmem, size = 0x12000, scoped, tag = 'internal scratch']
  #allocation2 [shape = 'f32[8,384]{1,0:T(8,128)}', space=vmem, size = 0x3000, scoped, tag = 'scratch operand']
  %s0 = inlined_call_operand.hbm [shape: f32[16,384], index: 0, kind: input, shape index: {}]
  %s1 = inlined_call_operand.hbm [shape: bf16[384,1536], index: 1, kind: input, shape index: {}]
  %s2 = inlined_call_operand.hbm [shape: f32[1,1536], index: 2, kind: input, shape index: {}]
  %s3 = inlined_call_operand.hbm [shape: bf16[1536,384], index: 3, kind: input, shape index: {}]
  %s4 = inlined_call_operand.hbm [shape: f32[1,384], index: 4, kind: input, shape index: {}]
  %s5 = inlined_call_operand.hbm [shape: f32[16,384], index: 5, kind: output, shape index: {}]
  %s6 = sld [smem:[#allocation0]]
  $region81: #{tpu_custom_call.1} parent=0
    _
  %s8 = ssub.s32 1, %s6
  %s9 = scalar_select 0, %s8, %s6
  $region1: #{tpu_custom_call.1} parent=0
    #allocation3 [shape = 'u8[24576]{0}', space=vmem, size = 0x6000, scoped, tag = 'input window, operand 0']
    #allocation4 [shape = 's32[2]{0}', space=sflag, size = 0x8, scoped, tag = 'scoped memory for tpu_custom_call.1']
    #allocation5 [shape = 's32[2]{0}', space=sflag, size = 0x8, scoped, tag = 'scoped memory for tpu_custom_call.1']
    #allocation6 [shape = 'u8[786432]{0}', space=vmem, size = 0xc0000, scoped, tag = 'input window, operand 1']
    #allocation7 [shape = 's32[2]{0}', space=sflag, size = 0x8, scoped, tag = 'scoped memory for tpu_custom_call.1']
    #allocation8 [shape = 'u8[4096]{0}', space=vmem, size = 0x1000, scoped, tag = 'input window, operand 2']
    #allocation9 [shape = 'u8[786432]{0}', space=vmem, size = 0xc0000, scoped, tag = 'input window, operand 3']
    #allocation10 [shape = 's32[2]{0}', space=sflag, size = 0x8, scoped, tag = 'scoped memory for tpu_custom_call.1']
    #allocation11 [shape = 'u8[1536]{0}', space=vmem, size = 0x800, scoped, tag = 'input window, operand 4, single buffered']
    #allocation12 [shape = 'u8[24576]{0}', space=vmem, size = 0x6000, scoped, tag = 'output window, operand 0']
    %10 = vsyncpa [#allocation4], 0
    %s11 = scalar_lea.sflag [#allocation4], 1
    %12 = vsyncpa %s11, 0
    %13 = vsyncpa [#allocation7], 0
    %s14 = scalar_lea.sflag [#allocation7], 1
    %15 = vsyncpa %s14, 0
    %16 = vsyncpa [#allocation10], 0
    %s17 = scalar_lea.sflag [#allocation10], 1
    %18 = vsyncpa %s17, 0
    %19 = vsyncpa [#allocation5], 0
    %s20 = scalar_lea.sflag [#allocation5], 1
    %21 = vsyncpa %s20, 0
    loop: start=0, step=1, limit=8
    $region2: #{tpu_custom_call.1} parent=1 // loop_pre_header
      _
    $region3: #{tpu_custom_call.1} parent=1 // loop_header
      %s23 = sphi 0, %s27
      %p24 = scmp.ge.s32.totalorder %s23, 8
      %s30 = sphi 0, %s42
      %s31 = sphi 0, %s38
      %s32 = sphi 0, %s30
      %s33 = sphi 0, %s31
      %s34 = sphi 0, %s32
      %s35 = sphi 0, %s33
      %s45 = sphi 0, %s47
      %s48 = sphi 0, %s45
      %s49 = sphi 0, %s48
      %s65 = sphi 0, %s49
      %s71 = sphi 0, %s73
      %s74 = sphi 0, %s71
      %s75 = sphi 0, %s74
      %s91 = sphi 0, %s75
      %s97 = sphi 0, %s99
      %s100 = sphi 0, %s97
      %s101 = sphi 0, %s100
      %s117 = sphi 0, %s101
      %s123 = sphi 0, %s125
      %s126 = sphi 0, %s123
      %s127 = sphi 0, %s126
      %s143 = sphi 0, %s127
      %s147 = sphi 0, %s147
      %s149 = sphi 0, %s147
      %s150 = sphi 0, %s149
      %s164 = sphi 0, %s150
      %s170 = sphi 0, %s172
      %s173 = sphi 0, %s170
      %s174 = sphi 0, %s173
      %s190 = sphi 0, %s174
    $region4: #{tpu_custom_call.1} parent=1 // loop_header_branch
      %26 = sbr.rel (%p24) target = $region8
    $region5: #{tpu_custom_call.1} parent=1 // loop_body
      %s28 = ssub.s32 %s23, 1
      %s29 = ssub.s32 %s23, 2
      %s36 = sadd.s32 1, %s31
      %p37 = scmp.ge.s32.totalorder %s36, 3
      %s38 = scalar_select %p37, 0, %s36
      %s39 = sadd.s32 1, %s30
      %s40 = scalar_select %p37, %s39, %s30
      %p41 = scmp.ge.s32.totalorder %s40, 2
      %s42 = scalar_select %p41, 0, %s40
      %s43 = ssub.s32 %s30, %s42
      %p44 = scmp.eq.s32.totalorder %s43, 0
      %s46 = sadd.s32 %s45, 1
      %s47 = scalar_select %p44, %s45, %s46
      %p50 = pneg %p44
      %p51 = scmp.eq.s32.totalorder %s23, 5
      %p52 = por %p50, %p51
      %p53 = scmp.ne.s32.totalorder %s45, %s48
      %p54 = scmp.eq.s32.totalorder %s23, 0
      %p55 = por %p53, %p54
      %p56 = scmp.ne.s32.totalorder %s45, %s48
      %p57 = scmp.eq.s32.totalorder %s28, 5
      %p58 = por %p56, %p57
      %p59 = scmp.ne.s32.totalorder %s48, %s49
      %p60 = scmp.eq.s32.totalorder %s28, 0
      %p61 = por %p59, %p60
      %p62 = scmp.ne.s32.totalorder %s48, %s49
      %p63 = scmp.eq.s32.totalorder %s29, 5
      %p64 = por %p62, %p63
      %p66 = scmp.ne.s32.totalorder %s49, %s65
      %p67 = scmp.eq.s32.totalorder %s29, 0
      %p68 = por %p66, %p67
      %s69 = ssub.s32 %s31, %s38
      %p70 = scmp.eq.s32.totalorder %s69, 0
      %s72 = sadd.s32 %s71, 1
      %s73 = scalar_select %p70, %s71, %s72
      %p76 = pneg %p70
      %p77 = scmp.eq.s32.totalorder %s23, 5
      %p78 = por %p76, %p77
      %p79 = scmp.ne.s32.totalorder %s71, %s74
      %p80 = scmp.eq.s32.totalorder %s23, 0
      %p81 = por %p79, %p80
      %p82 = scmp.ne.s32.totalorder %s71, %s74
      %p83 = scmp.eq.s32.totalorder %s28, 5
      %p84 = por %p82, %p83
      %p85 = scmp.ne.s32.totalorder %s74, %s75
      %p86 = scmp.eq.s32.totalorder %s28, 0
      %p87 = por %p85, %p86
      %p88 = scmp.ne.s32.totalorder %s74, %s75
      %p89 = scmp.eq.s32.totalorder %s29, 5
      %p90 = por %p88, %p89
      %p92 = scmp.ne.s32.totalorder %s75, %s91
      %p93 = scmp.eq.s32.totalorder %s29, 0
      %p94 = por %p92, %p93
      %s95 = ssub.s32 %s31, %s38
      %p96 = scmp.eq.s32.totalorder %s95, 0
      %s98 = sadd.s32 %s97, 1
      %s99 = scalar_select %p96, %s97, %s98
      %p102 = pneg %p96
      %p103 = scmp.eq.s32.totalorder %s23, 5
      %p104 = por %p102, %p103
      %p105 = scmp.ne.s32.totalorder %s97, %s100
      %p106 = scmp.eq.s32.totalorder %s23, 0
      %p107 = por %p105, %p106
      %p108 = scmp.ne.s32.totalorder %s97, %s100
      %p109 = scmp.eq.s32.totalorder %s28, 5
      %p110 = por %p108, %p109
      %p111 = scmp.ne.s32.totalorder %s100, %s101
      %p112 = scmp.eq.s32.totalorder %s28, 0
      %p113 = por %p111, %p112
      %p114 = scmp.ne.s32.totalorder %s100, %s101
      %p115 = scmp.eq.s32.totalorder %s29, 5
      %p116 = por %p114, %p115
      %p118 = scmp.ne.s32.totalorder %s101, %s117
      %p119 = scmp.eq.s32.totalorder %s29, 0
      %p120 = por %p118, %p119
      %s121 = ssub.s32 %s31, %s38
      %p122 = scmp.eq.s32.totalorder %s121, 0
      %s124 = sadd.s32 %s123, 1
      %s125 = scalar_select %p122, %s123, %s124
      %p128 = pneg %p122
      %p129 = scmp.eq.s32.totalorder %s23, 5
      %p130 = por %p128, %p129
      %p131 = scmp.ne.s32.totalorder %s123, %s126
      %p132 = scmp.eq.s32.totalorder %s23, 0
      %p133 = por %p131, %p132
      %p134 = scmp.ne.s32.totalorder %s123, %s126
      %p135 = scmp.eq.s32.totalorder %s28, 5
      %p136 = por %p134, %p135
      %p137 = scmp.ne.s32.totalorder %s126, %s127
      %p138 = scmp.eq.s32.totalorder %s28, 0
      %p139 = por %p137, %p138
      %p140 = scmp.ne.s32.totalorder %s126, %s127
      %p141 = scmp.eq.s32.totalorder %s29, 5
      %p142 = por %p140, %p141
      %p144 = scmp.ne.s32.totalorder %s127, %s143
      %p145 = scmp.eq.s32.totalorder %s29, 0
      %p146 = por %p144, %p145
      %s148 = sadd.s32 %s147, 1
      %p151 = scmp.eq.s32.totalorder %s23, 5
      %p152 = scmp.ne.s32.totalorder %s147, %s149
      %p153 = scmp.eq.s32.totalorder %s23, 0
      %p154 = por %p152, %p153
      %p155 = scmp.ne.s32.totalorder %s147, %s149
      %p156 = scmp.eq.s32.totalorder %s28, 5
      %p157 = por %p155, %p156
      %p158 = scmp.ne.s32.totalorder %s149, %s150
      %p159 = scmp.eq.s32.totalorder %s28, 0
      %p160 = por %p158, %p159
      %p161 = scmp.ne.s32.totalorder %s149, %s150
      %p162 = scmp.eq.s32.totalorder %s29, 5
      %p163 = por %p161, %p162
      %p165 = scmp.ne.s32.totalorder %s150, %s164
      %p166 = scmp.eq.s32.totalorder %s29, 0
      %p167 = por %p165, %p166
      %s168 = ssub.s32 %s30, %s42
      %p169 = scmp.eq.s32.totalorder %s168, 0
      %s171 = sadd.s32 %s170, 1
      %s172 = scalar_select %p169, %s170, %s171
      %p175 = pneg %p169
      %p176 = scmp.eq.s32.totalorder %s23, 5
      %p177 = por %p175, %p176
      %p178 = scmp.ne.s32.totalorder %s170, %s173
      %p179 = scmp.eq.s32.totalorder %s23, 0
      %p180 = por %p178, %p179
      %p181 = scmp.ne.s32.totalorder %s170, %s173
      %p182 = scmp.eq.s32.totalorder %s28, 5
      %p183 = por %p181, %p182
      %p184 = scmp.ne.s32.totalorder %s173, %s174
      %p185 = scmp.eq.s32.totalorder %s28, 0
      %p186 = por %p184, %p185
      %p187 = scmp.ne.s32.totalorder %s173, %s174
      %p188 = scmp.eq.s32.totalorder %s29, 5
      %p189 = por %p187, %p188
      %p191 = scmp.ne.s32.totalorder %s174, %s190
      %p192 = scmp.eq.s32.totalorder %s29, 0
      %p193 = por %p191, %p192
      %p194 = scmp.le.s32.totalorder 1, %s23
      %p195 = scmp.lt.s32.totalorder %s23, 7
      %p196 = pnand %p194, %p195
      %p197 = pneg %p196
      // Predicated region
      $region9: #{tpu_custom_call.1} parent=5 // pred_check
        _
      $region10: #{tpu_custom_call.1} parent=5 // pred_check_branch
        %199 = sbr.rel (%p196) target = $region12
      $region11: #{tpu_custom_call.1} parent=5 // pred_region
        %s200 = ssub.s32 %s23, 1
        // Predicated region
        $region13: #{tpu_custom_call.1} parent=11 // pred_check
          %p201 = pneg %p160
        $region14: #{tpu_custom_call.1} parent=11 // pred_check_branch
          %203 = sbr.rel (%p201) target = $region16
        $region15: #{tpu_custom_call.1} parent=11 // pred_region
          %s205 = ssub.s32 48, 48
          %206 = vsyncadd [#allocation10], %s205
          %s208 = sshll.u32 [#allocation11], 4
          %s209 = int_to_ptr.vmem [resolvable:$true] %s208
          %211 = dma.hbm_to_vmem [thread:$0]  %s4, 48, %s209, [#allocation10]
        $region16: #{tpu_custom_call.1} parent=11 // pred_fallthru
          _
      $region12: #{tpu_custom_call.1} parent=5 // pred_fallthru
        _
      %p212 = scmp.lt.s32.totalorder %s23, 6
      // Predicated region
      $region17: #{tpu_custom_call.1} parent=5 // pred_check
        %p213 = pneg %p212
      $region18: #{tpu_custom_call.1} parent=5 // pred_check_branch
        %215 = sbr.rel (%p213) target = $region20
      $region19: #{tpu_custom_call.1} parent=5 // pred_region
        // Predicated region
        $region21: #{tpu_custom_call.1} parent=19 // pred_check
          %p216 = pneg %p55
        $region22: #{tpu_custom_call.1} parent=19 // pred_check_branch
          %218 = sbr.rel (%p216) target = $region24
        $region23: #{tpu_custom_call.1} parent=19 // pred_region
          %s219 = sand.u32 %s45, 1
          %s220 = scalar_lea.sflag [#allocation4], %s219
          %s221 = sand.u32 %s45, 1
          %s222 = smul.addr %s221, 24
          %s223 = scalar_lea.vmem [#allocation3], %s222
          %s225 = ssub.s32 384, 384
          %226 = vsyncadd %s220, %s225
          %s227 = smul.addr %s30, 3
          %s228 = smul.addr %s227, 128
          %s229 = scalar_lea.hbm %s0, %s228
          %s231 = sshll.u32 %s223, 4
          %s232 = int_to_ptr.vmem [resolvable:$true] %s231
          %234 = dma.hbm_to_vmem [thread:$0]  %s229, 384, %s232, %s220
        $region24: #{tpu_custom_call.1} parent=19 // pred_fallthru
          _
        // Predicated region
        $region25: #{tpu_custom_call.1} parent=19 // pred_check
          %p235 = pneg %p81
        $region26: #{tpu_custom_call.1} parent=19 // pred_check_branch
          %237 = sbr.rel (%p235) target = $region28
        $region27: #{tpu_custom_call.1} parent=19 // pred_region
          %s238 = sand.u32 %s23, 1
          %s239 = scalar_lea.sflag [#allocation7], %s238
          %s240 = sand.u32 %s71, 1
          %s241 = smul.addr %s240, 768
          %s242 = scalar_lea.vmem [#allocation6], %s241
          %s243 = smul.u32 4, %s31
          %s245 = ssub.s32 12288, 12288
          %246 = vsyncadd %s239, %s245
          %s247 = smul.addr %s243, 64
          %s248 = scalar_lea.hbm %s1, %s247
          %s249 = sshll.u32 %s242, 4
          %s250 = int_to_ptr.vmem [resolvable:$true] %s249
          %255 = dma.hbm_to_vmem [thread:$0]  %s248, 12288, %s250, %s239, 768, 256, 16
        $region28: #{tpu_custom_call.1} parent=19 // pred_fallthru
          _
        // Predicated region
        $region29: #{tpu_custom_call.1} parent=19 // pred_check
          %p256 = pneg %p107
        $region30: #{tpu_custom_call.1} parent=19 // pred_check_branch
          %258 = sbr.rel (%p256) target = $region32
        $region31: #{tpu_custom_call.1} parent=19 // pred_region
          %s259 = sand.u32 %s23, 1
          %s260 = scalar_lea.sflag [#allocation7], %s259
          %s261 = sand.u32 %s97, 1
          %s262 = smul.addr %s261, 4
          %s263 = scalar_lea.vmem [#allocation8], %s262
          %s264 = smul.u32 4, %s31
          %s266 = ssub.s32 64, 64
          %267 = vsyncadd %s260, %s266
          %s268 = smul.addr %s264, 16
          %s269 = scalar_lea.hbm %s2, %s268
          %s271 = sshll.u32 %s263, 4
          %s272 = int_to_ptr.vmem [resolvable:$true] %s271
          %274 = dma.hbm_to_vmem [thread:$0]  %s269, 64, %s272, %s260
        $region32: #{tpu_custom_call.1} parent=19 // pred_fallthru
          _
        // Predicated region
        $region33: #{tpu_custom_call.1} parent=19 // pred_check
          %p275 = pneg %p133
        $region34: #{tpu_custom_call.1} parent=19 // pred_check_branch
          %277 = sbr.rel (%p275) target = $region36
        $region35: #{tpu_custom_call.1} parent=19 // pred_region
          %s278 = sand.u32 %s23, 1
          %s279 = scalar_lea.sflag [#allocation10], %s278
          %s280 = sand.u32 %s123, 1
          %s281 = smul.addr %s280, 768
          %s282 = scalar_lea.vmem [#allocation9], %s281
          %s283 = smul.u32 64, %s31
          %s285 = ssub.s32 12288, 12288
          %286 = vsyncadd %s279, %s285
          %s287 = smul.addr %s283, 3
          %s288 = smul.addr %s287, 64
          %s289 = scalar_lea.hbm %s3, %s288
          %s290 = sshll.u32 %s282, 4
          %s291 = int_to_ptr.vmem [resolvable:$true] %s290
          %296 = dma.hbm_to_vmem [thread:$0]  %s289, 12288, %s291, %s279, 192, 192, 12
        $region36: #{tpu_custom_call.1} parent=19 // pred_fallthru
          _
      $region20: #{tpu_custom_call.1} parent=5 // pred_fallthru
        _
      %p297 = scmp.le.s32.totalorder 1, %s23
      %p298 = scmp.lt.s32.totalorder %s23, 7
      %p299 = pnand %p297, %p298
      %p300 = pneg %p299
      // Predicated region
      $region37: #{tpu_custom_call.1} parent=5 // pred_check
        _
      $region38: #{tpu_custom_call.1} parent=5 // pred_check_branch
        %302 = sbr.rel (%p299) target = $region40
      $region39: #{tpu_custom_call.1} parent=5 // pred_region
        %s303 = ssub.s32 %s23, 1
        %s304 = sand.u32 %s48, 1
        %s305 = scalar_lea.sflag [#allocation4], %s304
        %s306 = sand.u32 %s48, 1
        %s307 = smul.addr %s306, 24
        %s308 = scalar_lea.vmem [#allocation3], %s307
        // Predicated region
        $region41: #{tpu_custom_call.1} parent=39 // pred_check
          %p309 = pneg %p61
        $region42: #{tpu_custom_call.1} parent=39 // pred_check_branch
          %311 = sbr.rel (%p309) target = $region44
        $region43: #{tpu_custom_call.1} parent=39 // pred_region
          %312 = dma.done %s305, 384
        $region44: #{tpu_custom_call.1} parent=39 // pred_fallthru
          _
        %s313 = sand.u32 %s28, 1
        %s314 = scalar_lea.sflag [#allocation7], %s313
        %s315 = sand.u32 %s74, 1
        %s316 = smul.addr %s315, 768
        %s317 = scalar_lea.vmem [#allocation6], %s316
        // Predicated region
        $region45: #{tpu_custom_call.1} parent=39 // pred_check
          %p318 = pneg %p87
        $region46: #{tpu_custom_call.1} parent=39 // pred_check_branch
          %320 = sbr.rel (%p318) target = $region48
        $region47: #{tpu_custom_call.1} parent=39 // pred_region
          %321 = dma.done %s314, 12288
        $region48: #{tpu_custom_call.1} parent=39 // pred_fallthru
          _
        %s322 = sand.u32 %s28, 1
        %s323 = scalar_lea.sflag [#allocation7], %s322
        %s324 = sand.u32 %s100, 1
        %s325 = smul.addr %s324, 4
        %s326 = scalar_lea.vmem [#allocation8], %s325
        // Predicated region
        $region49: #{tpu_custom_call.1} parent=39 // pred_check
          %p327 = pneg %p113
        $region50: #{tpu_custom_call.1} parent=39 // pred_check_branch
          %329 = sbr.rel (%p327) target = $region52
        $region51: #{tpu_custom_call.1} parent=39 // pred_region
          %330 = dma.done %s323, 64
        $region52: #{tpu_custom_call.1} parent=39 // pred_fallthru
          _
        %s331 = sand.u32 %s28, 1
        %s332 = scalar_lea.sflag [#allocation10], %s331
        %s333 = sand.u32 %s126, 1
        %s334 = smul.addr %s333, 768
        %s335 = scalar_lea.vmem [#allocation9], %s334
        // Predicated region
        $region53: #{tpu_custom_call.1} parent=39 // pred_check
          %p336 = pneg %p139
        $region54: #{tpu_custom_call.1} parent=39 // pred_check_branch
          %338 = sbr.rel (%p336) target = $region56
        $region55: #{tpu_custom_call.1} parent=39 // pred_region
          %339 = dma.done %s332, 12288
        $region56: #{tpu_custom_call.1} parent=39 // pred_fallthru
          _
        // Predicated region
        $region57: #{tpu_custom_call.1} parent=39 // pred_check
          %p340 = pneg %p160
        $region58: #{tpu_custom_call.1} parent=39 // pred_check_branch
          %342 = sbr.rel (%p340) target = $region60
        $region59: #{tpu_custom_call.1} parent=39 // pred_region
          %343 = dma.done [#allocation10], 48
        $region60: #{tpu_custom_call.1} parent=39 // pred_fallthru
          _
        %s344 = sand.u32 %s48, 1
        %s345 = scalar_lea.sflag [#allocation4], %s344
        %s346 = sand.u32 %s48, 1
        %s347 = smul.addr %s346, 24
        %s348 = scalar_lea.vmem [#allocation3], %s347
        %p349 = pneg %p61
        %p350 = pneg %p58
        %s351 = sand.u32 %s28, 1
        %s352 = scalar_lea.sflag [#allocation7], %s351
        %s353 = sand.u32 %s74, 1
        %s354 = smul.addr %s353, 768
        %s355 = scalar_lea.vmem [#allocation6], %s354
        %p356 = pneg %p87
        %p357 = pneg %p84
        %s358 = sand.u32 %s28, 1
        %s359 = scalar_lea.sflag [#allocation7], %s358
        %s360 = sand.u32 %s100, 1
        %s361 = smul.addr %s360, 4
        %s362 = scalar_lea.vmem [#allocation8], %s361
        %p363 = pneg %p113
        %p364 = pneg %p110
        %s365 = sand.u32 %s28, 1
        %s366 = scalar_lea.sflag [#allocation10], %s365
        %s367 = sand.u32 %s126, 1
        %s368 = smul.addr %s367, 768
        %s369 = scalar_lea.vmem [#allocation9], %s368
        %p370 = pneg %p139
        %p371 = pneg %p136
        %p372 = pneg %p160
        %p373 = pneg %p157
        %p374 = pneg %p186
        %p375 = pneg %p183
        %s376 = sand.u32 %s173, 1
        %s377 = scalar_lea.sflag [#allocation5], %s376
        %s378 = sand.u32 %s173, 1
        %s379 = smul.addr %s378, 24
        %s380 = scalar_lea.vmem [#allocation12], %s379
        %s381 = smul.u32 4, %s33
        %s382 = smul.u32 4, %s33
        %s383 = smul.u32 64, %s33
        %p385 = scmp.eq.s32.totalorder %s33, 0
        // Predicated region
        $region61: #{tpu_custom_call.1} parent=39 // pred_check
          %p386 = pneg %p385
        $region62: #{tpu_custom_call.1} parent=39 // pred_check_branch
          %388 = sbr.rel (%p386) target = $region64
        $region63: #{tpu_custom_call.1} parent=39 // pred_region
          %389 = vst [vmem:[#allocation2] sm:$0xff] 0.0
          %390 = vst [vmem:[#allocation2 + $0x8] sm:$0xff] 0.0
          %391 = vst [vmem:[#allocation2 + $0x10] sm:$0xff] 0.0
        $region64: #{tpu_custom_call.1} parent=39 // pred_fallthru
          _
        %v392 = vld [vmem:[%s308] sm:$0xff]
        %v393 = vld [vmem:[%s308 + $0x8] sm:$0xff]
        %v394 = vld [vmem:[%s308 + $0x10] sm:$0xff]
        %v395 = vpack.c.bf16 %v392, %v392
        %v396 = vpack.c.bf16 %v393, %v393
        %v397 = vpack.c.bf16 %v394, %v394
        %v398 = vld [vmem:[%s317] sm:$0xff]
        %v399 = vld [vmem:[%s317 + $0x8] sm:$0xff]
        %v400 = vld [vmem:[%s317 + $0x10] sm:$0xff]
        %v401 = vld [vmem:[%s317 + $0x18] sm:$0xff]
        %v402 = vld [vmem:[%s317 + $0x20] sm:$0xff]
        %v403 = vld [vmem:[%s317 + $0x28] sm:$0xff]
        %v404 = vld [vmem:[%s317 + $0x30] sm:$0xff]
        %v405 = vld [vmem:[%s317 + $0x38] sm:$0xff]
        %v406 = vld [vmem:[%s317 + $0x40] sm:$0xff]
        %v407 = vld [vmem:[%s317 + $0x48] sm:$0xff]
        %v408 = vld [vmem:[%s317 + $0x50] sm:$0xff]
        %v409 = vld [vmem:[%s317 + $0x58] sm:$0xff]
        %v410 = vld [vmem:[%s317 + $0x60] sm:$0xff]
        %v411 = vld [vmem:[%s317 + $0x68] sm:$0xff]
        %v412 = vld [vmem:[%s317 + $0x70] sm:$0xff]
        %v413 = vld [vmem:[%s317 + $0x78] sm:$0xff]
        %v414 = vld [vmem:[%s317 + $0x80] sm:$0xff]
        %v415 = vld [vmem:[%s317 + $0x88] sm:$0xff]
        %v416 = vld [vmem:[%s317 + $0x90] sm:$0xff]
        %v417 = vld [vmem:[%s317 + $0x98] sm:$0xff]
        %v418 = vld [vmem:[%s317 + $0xa0] sm:$0xff]
        %v419 = vld [vmem:[%s317 + $0xa8] sm:$0xff]
        %v420 = vld [vmem:[%s317 + $0xb0] sm:$0xff]
        %v421 = vld [vmem:[%s317 + $0xb8] sm:$0xff]
        %v422 = vld [vmem:[%s317 + $0xc0] sm:$0xff]
        %v423 = vld [vmem:[%s317 + $0xc8] sm:$0xff]
        %v424 = vld [vmem:[%s317 + $0xd0] sm:$0xff]
        %v425 = vld [vmem:[%s317 + $0xd8] sm:$0xff]
        %v426 = vld [vmem:[%s317 + $0xe0] sm:$0xff]
        %v427 = vld [vmem:[%s317 + $0xe8] sm:$0xff]
        %v428 = vld [vmem:[%s317 + $0xf0] sm:$0xff]
        %v429 = vld [vmem:[%s317 + $0xf8] sm:$0xff]
        %v430 = vld [vmem:[%s317 + $0x100] sm:$0xff]
        %v431 = vld [vmem:[%s317 + $0x108] sm:$0xff]
        %v432 = vld [vmem:[%s317 + $0x110] sm:$0xff]
        %v433 = vld [vmem:[%s317 + $0x118] sm:$0xff]
        %v434 = vld [vmem:[%s317 + $0x120] sm:$0xff]
        %v435 = vld [vmem:[%s317 + $0x128] sm:$0xff]
        %v436 = vld [vmem:[%s317 + $0x130] sm:$0xff]
        %v437 = vld [vmem:[%s317 + $0x138] sm:$0xff]
        %v438 = vld [vmem:[%s317 + $0x140] sm:$0xff]
        %v439 = vld [vmem:[%s317 + $0x148] sm:$0xff]
        %v440 = vld [vmem:[%s317 + $0x150] sm:$0xff]
        %v441 = vld [vmem:[%s317 + $0x158] sm:$0xff]
        %v442 = vld [vmem:[%s317 + $0x160] sm:$0xff]
        %v443 = vld [vmem:[%s317 + $0x168] sm:$0xff]
        %v444 = vld [vmem:[%s317 + $0x170] sm:$0xff]
        %v445 = vld [vmem:[%s317 + $0x178] sm:$0xff]
        %v446 = vld [vmem:[%s317 + $0x180] sm:$0xff]
        %v447 = vld [vmem:[%s317 + $0x188] sm:$0xff]
        %v448 = vld [vmem:[%s317 + $0x190] sm:$0xff]
        %v449 = vld [vmem:[%s317 + $0x198] sm:$0xff]
        %v450 = vld [vmem:[%s317 + $0x1a0] sm:$0xff]
        %v451 = vld [vmem:[%s317 + $0x1a8] sm:$0xff]
        %v452 = vld [vmem:[%s317 + $0x1b0] sm:$0xff]
        %v453 = vld [vmem:[%s317 + $0x1b8] sm:$0xff]
        %v454 = vld [vmem:[%s317 + $0x1c0] sm:$0xff]
        %v455 = vld [vmem:[%s317 + $0x1c8] sm:$0xff]
        %v456 = vld [vmem:[%s317 + $0x1d0] sm:$0xff]
        %v457 = vld [vmem:[%s317 + $0x1d8] sm:$0xff]
        %v458 = vld [vmem:[%s317 + $0x1e0] sm:$0xff]
        %v459 = vld [vmem:[%s317 + $0x1e8] sm:$0xff]
        %v460 = vld [vmem:[%s317 + $0x1f0] sm:$0xff]
        %v461 = vld [vmem:[%s317 + $0x1f8] sm:$0xff]
        %v462 = vld [vmem:[%s317 + $0x200] sm:$0xff]
        %v463 = vld [vmem:[%s317 + $0x208] sm:$0xff]
        %v464 = vld [vmem:[%s317 + $0x210] sm:$0xff]
        %v465 = vld [vmem:[%s317 + $0x218] sm:$0xff]
        %v466 = vld [vmem:[%s317 + $0x220] sm:$0xff]
        %v467 = vld [vmem:[%s317 + $0x228] sm:$0xff]
        %v468 = vld [vmem:[%s317 + $0x230] sm:$0xff]
        %v469 = vld [vmem:[%s317 + $0x238] sm:$0xff]
        %v470 = vld [vmem:[%s317 + $0x240] sm:$0xff]
        %v471 = vld [vmem:[%s317 + $0x248] sm:$0xff]
        %v472 = vld [vmem:[%s317 + $0x250] sm:$0xff]
        %v473 = vld [vmem:[%s317 + $0x258] sm:$0xff]
        %v474 = vld [vmem:[%s317 + $0x260] sm:$0xff]
        %v475 = vld [vmem:[%s317 + $0x268] sm:$0xff]
        %v476 = vld [vmem:[%s317 + $0x270] sm:$0xff]
        %v477 = vld [vmem:[%s317 + $0x278] sm:$0xff]
        %v478 = vld [vmem:[%s317 + $0x280] sm:$0xff]
        %v479 = vld [vmem:[%s317 + $0x288] sm:$0xff]
        %v480 = vld [vmem:[%s317 + $0x290] sm:$0xff]
        %v481 = vld [vmem:[%s317 + $0x298] sm:$0xff]
        %v482 = vld [vmem:[%s317 + $0x2a0] sm:$0xff]
        %v483 = vld [vmem:[%s317 + $0x2a8] sm:$0xff]
        %v484 = vld [vmem:[%s317 + $0x2b0] sm:$0xff]
        %v485 = vld [vmem:[%s317 + $0x2b8] sm:$0xff]
        %v486 = vld [vmem:[%s317 + $0x2c0] sm:$0xff]
        %v487 = vld [vmem:[%s317 + $0x2c8] sm:$0xff]
        %v488 = vld [vmem:[%s317 + $0x2d0] sm:$0xff]
        %v489 = vld [vmem:[%s317 + $0x2d8] sm:$0xff]
        %v490 = vld [vmem:[%s317 + $0x2e0] sm:$0xff]
        %v491 = vld [vmem:[%s317 + $0x2e8] sm:$0xff]
        %v492 = vld [vmem:[%s317 + $0x2f0] sm:$0xff]
        %v493 = vld [vmem:[%s317 + $0x2f8] sm:$0xff]
        %v494 = vld [vmem:[%s326] sm:$0xf]
        %v496 = vlaneseq
        %v497 = vshrl.u32 %v496, 7
        %v498 = vsub.s32 0, %v497
        %v499 = vrot.slane %v494, %v498
        %v500 = vlaneseq
        %v501 = vshrl.u32 %v500, 7
        %v502 = vsub.s32 1, %v501
        %v503 = vrot.slane %v494, %v502
        %v504 = vlaneseq
        %v505 = vshrl.u32 %v504, 7
        %v506 = vsub.s32 2, %v505
        %v507 = vrot.slane %v494, %v506
        %v508 = vlaneseq
        %v509 = vshrl.u32 %v508, 7
        %v510 = vsub.s32 3, %v509
        %v511 = vrot.slane %v494, %v510
        %v612 = vunpack.c.l.b16 %v398
        %v613 = vunpack.c.h.b16 %v398
        %v614 = vunpack.c.l.b16 %v399
        %v615 = vunpack.c.h.b16 %v399
        %v616 = vunpack.c.l.b16 %v400
        %v617 = vunpack.c.h.b16 %v400
        %v618 = vunpack.c.l.b16 %v401
        %v619 = vunpack.c.h.b16 %v401
        %v620 = vunpack.c.l.b16 %v402
        %v621 = vunpack.c.h.b16 %v402
        %v622 = vunpack.c.l.b16 %v403
        %v623 = vunpack.c.h.b16 %v403
        %v624 = vunpack.c.l.b16 %v404
        %v625 = vunpack.c.h.b16 %v404
        %v626 = vunpack.c.l.b16 %v405
        %v627 = vunpack.c.h.b16 %v405
        %v628 = vunpack.c.l.b16 %v406
        %v629 = vunpack.c.h.b16 %v406
        %v630 = vunpack.c.l.b16 %v407
        %v631 = vunpack.c.h.b16 %v407
        %v632 = vunpack.c.l.b16 %v408
        %v633 = vunpack.c.h.b16 %v408
        %v634 = vunpack.c.l.b16 %v409
        %v635 = vunpack.c.h.b16 %v409
        %v636 = vunpack.c.l.b16 %v410
        %v637 = vunpack.c.h.b16 %v410
        %v638 = vunpack.c.l.b16 %v411
        %v639 = vunpack.c.h.b16 %v411
        %v640 = vunpack.c.l.b16 %v412
        %v641 = vunpack.c.h.b16 %v412
        %v642 = vunpack.c.l.b16 %v413
        %v643 = vunpack.c.h.b16 %v413
        %v644 = vunpack.c.l.b16 %v414
        %v645 = vunpack.c.h.b16 %v414
        %v646 = vunpack.c.l.b16 %v415
        %v647 = vunpack.c.h.b16 %v415
        %v648 = vunpack.c.l.b16 %v416
        %v649 = vunpack.c.h.b16 %v416
        %v650 = vunpack.c.l.b16 %v417
        %v651 = vunpack.c.h.b16 %v417
        %v652 = vunpack.c.l.b16 %v418
        %v653 = vunpack.c.h.b16 %v418
        %v654 = vunpack.c.l.b16 %v419
        %v655 = vunpack.c.h.b16 %v419
        %v656 = vunpack.c.l.b16 %v420
        %v657 = vunpack.c.h.b16 %v420
        %v658 = vunpack.c.l.b16 %v421
        %v659 = vunpack.c.h.b16 %v421
        %v660 = vunpack.c.l.b16 %v422
        %v661 = vunpack.c.h.b16 %v422
        %v662 = vunpack.c.l.b16 %v423
        %v663 = vunpack.c.h.b16 %v423
        %v664 = vunpack.c.l.b16 %v424
        %v665 = vunpack.c.h.b16 %v424
        %v666 = vunpack.c.l.b16 %v425
        %v667 = vunpack.c.h.b16 %v425
        %v668 = vunpack.c.l.b16 %v426
        %v669 = vunpack.c.h.b16 %v426
        %v670 = vunpack.c.l.b16 %v427
        %v671 = vunpack.c.h.b16 %v427
        %v672 = vunpack.c.l.b16 %v428
        %v673 = vunpack.c.h.b16 %v428
        %v674 = vunpack.c.l.b16 %v429
        %v675 = vunpack.c.h.b16 %v429
        %v676 = vunpack.c.l.b16 %v430
        %v677 = vunpack.c.h.b16 %v430
        %v678 = vunpack.c.l.b16 %v431
        %v679 = vunpack.c.h.b16 %v431
        %v680 = vunpack.c.l.b16 %v432
        %v681 = vunpack.c.h.b16 %v432
        %v682 = vunpack.c.l.b16 %v433
        %v683 = vunpack.c.h.b16 %v433
        %v684 = vunpack.c.l.b16 %v434
        %v685 = vunpack.c.h.b16 %v434
        %v686 = vunpack.c.l.b16 %v435
        %v687 = vunpack.c.h.b16 %v435
        %v688 = vunpack.c.l.b16 %v436
        %v689 = vunpack.c.h.b16 %v436
        %v690 = vunpack.c.l.b16 %v437
        %v691 = vunpack.c.h.b16 %v437
        %v692 = vunpack.c.l.b16 %v438
        %v693 = vunpack.c.h.b16 %v438
        %v694 = vunpack.c.l.b16 %v439
        %v695 = vunpack.c.h.b16 %v439
        %v696 = vunpack.c.l.b16 %v440
        %v697 = vunpack.c.h.b16 %v440
        %v698 = vunpack.c.l.b16 %v441
        %v699 = vunpack.c.h.b16 %v441
        %v700 = vunpack.c.l.b16 %v442
        %v701 = vunpack.c.h.b16 %v442
        %v702 = vunpack.c.l.b16 %v443
        %v703 = vunpack.c.h.b16 %v443
        %v704 = vunpack.c.l.b16 %v444
        %v705 = vunpack.c.h.b16 %v444
        %v706 = vunpack.c.l.b16 %v445
        %v707 = vunpack.c.h.b16 %v445
        %v708 = vunpack.c.l.b16 %v446
        %v709 = vunpack.c.h.b16 %v446
        %v710 = vunpack.c.l.b16 %v447
        %v711 = vunpack.c.h.b16 %v447
        %v712 = vunpack.c.l.b16 %v448
        %v713 = vunpack.c.h.b16 %v448
        %v714 = vunpack.c.l.b16 %v449
        %v715 = vunpack.c.h.b16 %v449
        %v716 = vunpack.c.l.b16 %v450
        %v717 = vunpack.c.h.b16 %v450
        %v718 = vunpack.c.l.b16 %v451
        %v719 = vunpack.c.h.b16 %v451
        %v720 = vunpack.c.l.b16 %v452
        %v721 = vunpack.c.h.b16 %v452
        %v722 = vunpack.c.l.b16 %v453
        %v723 = vunpack.c.h.b16 %v453
        %v724 = vunpack.c.l.b16 %v454
        %v725 = vunpack.c.h.b16 %v454
        %v726 = vunpack.c.l.b16 %v455
        %v727 = vunpack.c.h.b16 %v455
        %v728 = vunpack.c.l.b16 %v456
        %v729 = vunpack.c.h.b16 %v456
        %v730 = vunpack.c.l.b16 %v457
        %v731 = vunpack.c.h.b16 %v457
        %v732 = vunpack.c.l.b16 %v458
        %v733 = vunpack.c.h.b16 %v458
        %v734 = vunpack.c.l.b16 %v459
        %v735 = vunpack.c.h.b16 %v459
        %v736 = vunpack.c.l.b16 %v460
        %v737 = vunpack.c.h.b16 %v460
        %v738 = vunpack.c.l.b16 %v461
        %v739 = vunpack.c.h.b16 %v461
        %v740 = vunpack.c.l.b16 %v462
        %v741 = vunpack.c.h.b16 %v462
        %v742 = vunpack.c.l.b16 %v463
        %v743 = vunpack.c.h.b16 %v463
        %v744 = vunpack.c.l.b16 %v464
        %v745 = vunpack.c.h.b16 %v464
        %v746 = vunpack.c.l.b16 %v465
        %v747 = vunpack.c.h.b16 %v465
        %v748 = vunpack.c.l.b16 %v466
        %v749 = vunpack.c.h.b16 %v466
        %v750 = vunpack.c.l.b16 %v467
        %v751 = vunpack.c.h.b16 %v467
        %v752 = vunpack.c.l.b16 %v468
        %v753 = vunpack.c.h.b16 %v468
        %v754 = vunpack.c.l.b16 %v469
        %v755 = vunpack.c.h.b16 %v469
        %v756 = vunpack.c.l.b16 %v470
        %v757 = vunpack.c.h.b16 %v470
        %v758 = vunpack.c.l.b16 %v471
        %v759 = vunpack.c.h.b16 %v471
        %v760 = vunpack.c.l.b16 %v472
        %v761 = vunpack.c.h.b16 %v472
        %v762 = vunpack.c.l.b16 %v473
        %v763 = vunpack.c.h.b16 %v473
        %v764 = vunpack.c.l.b16 %v474
        %v765 = vunpack.c.h.b16 %v474
        %v766 = vunpack.c.l.b16 %v475
        %v767 = vunpack.c.h.b16 %v475
        %v768 = vunpack.c.l.b16 %v476
        %v769 = vunpack.c.h.b16 %v476
        %v770 = vunpack.c.l.b16 %v477
        %v771 = vunpack.c.h.b16 %v477
        %v772 = vunpack.c.l.b16 %v478
        %v773 = vunpack.c.h.b16 %v478
        %v774 = vunpack.c.l.b16 %v479
        %v775 = vunpack.c.h.b16 %v479
        %v776 = vunpack.c.l.b16 %v480
        %v777 = vunpack.c.h.b16 %v480
        %v778 = vunpack.c.l.b16 %v481
        %v779 = vunpack.c.h.b16 %v481
        %v780 = vunpack.c.l.b16 %v482
        %v781 = vunpack.c.h.b16 %v482
        %v782 = vunpack.c.l.b16 %v483
        %v783 = vunpack.c.h.b16 %v483
        %v784 = vunpack.c.l.b16 %v484
        %v785 = vunpack.c.h.b16 %v484
        %v786 = vunpack.c.l.b16 %v485
        %v787 = vunpack.c.h.b16 %v485
        %v788 = vunpack.c.l.b16 %v486
        %v789 = vunpack.c.h.b16 %v486
        %v790 = vunpack.c.l.b16 %v487
        %v791 = vunpack.c.h.b16 %v487
        %v792 = vunpack.c.l.b16 %v488
        %v793 = vunpack.c.h.b16 %v488
        %v794 = vunpack.c.l.b16 %v489
        %v795 = vunpack.c.h.b16 %v489
        %v796 = vunpack.c.l.b16 %v490
        %v797 = vunpack.c.h.b16 %v490
        %v798 = vunpack.c.l.b16 %v491
        %v799 = vunpack.c.h.b16 %v491
        %v800 = vunpack.c.l.b16 %v492
        %v801 = vunpack.c.h.b16 %v492
        %v802 = vunpack.c.l.b16 %v493
        %v803 = vunpack.c.h.b16 %v493
        %v804 = vpack.c.b16 %v616, %v612
        %v805 = vpack.c.b16 %v617, %v613
        %v806 = vpack.c.b16 %v618, %v614
        %v807 = vpack.c.b16 %v619, %v615
        %v808 = vpack.c.b16 %v624, %v620
        %v809 = vpack.c.b16 %v625, %v621
        %v810 = vpack.c.b16 %v626, %v622
        %v811 = vpack.c.b16 %v627, %v623
        %v812 = vpack.c.b16 %v632, %v628
        %v813 = vpack.c.b16 %v633, %v629
        %v814 = vpack.c.b16 %v634, %v630
        %v815 = vpack.c.b16 %v635, %v631
        %v816 = vpack.c.b16 %v640, %v636
        %v817 = vpack.c.b16 %v641, %v637
        %v818 = vpack.c.b16 %v642, %v638
        %v819 = vpack.c.b16 %v643, %v639
        %v820 = vpack.c.b16 %v648, %v644
        %v821 = vpack.c.b16 %v649, %v645
        %v822 = vpack.c.b16 %v650, %v646
        %v823 = vpack.c.b16 %v651, %v647
        %v824 = vpack.c.b16 %v656, %v652
        %v825 = vpack.c.b16 %v657, %v653
        %v826 = vpack.c.b16 %v658, %v654
        %v827 = vpack.c.b16 %v659, %v655
        %v828 = vpack.c.b16 %v664, %v660
        %v829 = vpack.c.b16 %v665, %v661
        %v830 = vpack.c.b16 %v666, %v662
        %v831 = vpack.c.b16 %v667, %v663
        %v832 = vpack.c.b16 %v672, %v668
        %v833 = vpack.c.b16 %v673, %v669
        %v834 = vpack.c.b16 %v674, %v670
        %v835 = vpack.c.b16 %v675, %v671
        %v836 = vpack.c.b16 %v680, %v676
        %v837 = vpack.c.b16 %v681, %v677
        %v838 = vpack.c.b16 %v682, %v678
        %v839 = vpack.c.b16 %v683, %v679
        %v840 = vpack.c.b16 %v688, %v684
        %v841 = vpack.c.b16 %v689, %v685
        %v842 = vpack.c.b16 %v690, %v686
        %v843 = vpack.c.b16 %v691, %v687
        %v844 = vpack.c.b16 %v696, %v692
        %v845 = vpack.c.b16 %v697, %v693
        %v846 = vpack.c.b16 %v698, %v694
        %v847 = vpack.c.b16 %v699, %v695
        %v848 = vpack.c.b16 %v704, %v700
        %v849 = vpack.c.b16 %v705, %v701
        %v850 = vpack.c.b16 %v706, %v702
        %v851 = vpack.c.b16 %v707, %v703
        %v852 = vpack.c.b16 %v712, %v708
        %v853 = vpack.c.b16 %v713, %v709
        %v854 = vpack.c.b16 %v714, %v710
        %v855 = vpack.c.b16 %v715, %v711
        %v856 = vpack.c.b16 %v720, %v716
        %v857 = vpack.c.b16 %v721, %v717
        %v858 = vpack.c.b16 %v722, %v718
        %v859 = vpack.c.b16 %v723, %v719
        %v860 = vpack.c.b16 %v728, %v724
        %v861 = vpack.c.b16 %v729, %v725
        %v862 = vpack.c.b16 %v730, %v726
        %v863 = vpack.c.b16 %v731, %v727
        %v864 = vpack.c.b16 %v736, %v732
        %v865 = vpack.c.b16 %v737, %v733
        %v866 = vpack.c.b16 %v738, %v734
        %v867 = vpack.c.b16 %v739, %v735
        %v868 = vpack.c.b16 %v744, %v740
        %v869 = vpack.c.b16 %v745, %v741
        %v870 = vpack.c.b16 %v746, %v742
        %v871 = vpack.c.b16 %v747, %v743
        %v872 = vpack.c.b16 %v752, %v748
        %v873 = vpack.c.b16 %v753, %v749
        %v874 = vpack.c.b16 %v754, %v750
        %v875 = vpack.c.b16 %v755, %v751
        %v876 = vpack.c.b16 %v760, %v756
        %v877 = vpack.c.b16 %v761, %v757
        %v878 = vpack.c.b16 %v762, %v758
        %v879 = vpack.c.b16 %v763, %v759
        %v880 = vpack.c.b16 %v768, %v764
        %v881 = vpack.c.b16 %v769, %v765
        %v882 = vpack.c.b16 %v770, %v766
        %v883 = vpack.c.b16 %v771, %v767
        %v884 = vpack.c.b16 %v776, %v772
        %v885 = vpack.c.b16 %v777, %v773
        %v886 = vpack.c.b16 %v778, %v774
        %v887 = vpack.c.b16 %v779, %v775
        %v888 = vpack.c.b16 %v784, %v780
        %v889 = vpack.c.b16 %v785, %v781
        %v890 = vpack.c.b16 %v786, %v782
        %v891 = vpack.c.b16 %v787, %v783
        %v892 = vpack.c.b16 %v792, %v788
        %v893 = vpack.c.b16 %v793, %v789
        %v894 = vpack.c.b16 %v794, %v790
        %v895 = vpack.c.b16 %v795, %v791
        %v896 = vpack.c.b16 %v800, %v796
        %v897 = vpack.c.b16 %v801, %v797
        %v898 = vpack.c.b16 %v802, %v798
        %v899 = vpack.c.b16 %v803, %v799
        %996 = vmatprep.subr.bf16.mxu0 %v805
        %997 = vmatpush1.bf16.msra.mxu0 %v804
        %998 = vmatprep.subr.bf16.mxu0 %v809
        %999 = vmatpush1.bf16.msra.mxu0 %v808
        %1000 = vmatprep.subr.bf16.mxu0 %v813
        %1001 = vmatpush1.bf16.msra.mxu0 %v812
        %1002 = vmatprep.subr.bf16.mxu0 %v817
        %1003 = vmatpush1.bf16.msra.mxu0 %v816
        %1004 = vmatprep.subr.bf16.mxu0 %v821
        %1005 = vmatpush1.bf16.msra.mxu0 %v820
        %1006 = vmatprep.subr.bf16.mxu0 %v825
        %1007 = vmatpush1.bf16.msra.mxu0 %v824
        %1008 = vmatprep.subr.bf16.mxu0 %v829
        %1009 = vmatpush1.bf16.msra.mxu0 %v828
        %1010 = vmatprep.subr.bf16.mxu0 %v833
        %1011 = vmatpush1.bf16.msra.mxu0 %v832
        %1012 = vmatprep.subr.bf16.mxu0 %v837
        %1013 = vmatpush1.bf16.msra.mxu0 %v836
        %1014 = vmatprep.subr.bf16.mxu0 %v841
        %1015 = vmatpush1.bf16.msra.mxu0 %v840
        %1016 = vmatprep.subr.bf16.mxu0 %v845
        %1017 = vmatpush1.bf16.msra.mxu0 %v844
        %1018 = vmatprep.subr.bf16.mxu0 %v849
        %1019 = vmatpush1.bf16.msra.mxu0 %v848
        %1020 = vmatprep.subr.bf16.mxu0 %v853
        %1021 = vmatpush1.bf16.msra.mxu0 %v852
        %1022 = vmatprep.subr.bf16.mxu0 %v857
        %1023 = vmatpush1.bf16.msra.mxu0 %v856
        %1024 = vmatprep.subr.bf16.mxu0 %v861
        %1025 = vmatpush1.bf16.msra.mxu0 %v860
        %1026 = vmatprep.subr.bf16.mxu0 %v865
        %1027 = vmatpush1.bf16.msra.mxu0 %v864
        %1028 = vmatprep.mubr.bf16.mxu0 %v396
        %1029 = vmatmul.mubr.bf16.gmra.mrb[0].mxu0 %v395
        %v1030 = vpop.f32.mrb[0].mxu0
        %v1031 = vadd.f32 %v499, %v1030
        %v1032 = vpop.f32.mrb[0].mxu0
        %v1033 = vadd.f32 %v503, %v1032
        %v1034 = vpop.f32.mrb[0].mxu0
        %v1035 = vpop.f32.mrb[0].mxu0
        %1036 = vdwg.mxu0
        %1037 = vmatprep.subr.bf16.mxu0 %v869
        %1038 = vmatpush1.bf16.msra.mxu0 %v868
        %1039 = vmatprep.subr.bf16.mxu0 %v873
        %1040 = vmatpush1.bf16.msra.mxu0 %v872
        %1041 = vmatprep.subr.bf16.mxu0 %v877
        %1042 = vmatpush1.bf16.msra.mxu0 %v876
        %1043 = vmatprep.subr.bf16.mxu0 %v881
        %1044 = vmatpush1.bf16.msra.mxu0 %v880
        %1045 = vmatprep.subr.bf16.mxu0 %v885
        %1046 = vmatpush1.bf16.msra.mxu0 %v884
        %1047 = vmatprep.subr.bf16.mxu0 %v889
        %1048 = vmatpush1.bf16.msra.mxu0 %v888
        %1049 = vmatprep.subr.bf16.mxu0 %v893
        %1050 = vmatpush1.bf16.msra.mxu0 %v892
        %1051 = vmatprep.subr.bf16.mxu0 %v897
        %1052 = vmatpush1.bf16.msra.mxu0 %v896
        %1053 = vmatprep.subr.bf16.mxu0 0
        %1054 = vmatpush1.bf16.msra.mxu0 0
        %1055 = vmatprep.subr.bf16.mxu0 0
        %1056 = vmatpush1.bf16.msra.mxu0 0
        %1057 = vmatprep.subr.bf16.mxu0 0
        %1058 = vmatpush1.bf16.msra.mxu0 0
        %1059 = vmatprep.subr.bf16.mxu0 0
        %1060 = vmatpush1.bf16.msra.mxu0 0
        %1061 = vmatprep.subr.bf16.mxu0 0
        %1062 = vmatpush1.bf16.msra.mxu0 0
        %1063 = vmatprep.subr.bf16.mxu0 0
        %1064 = vmatpush1.bf16.msra.mxu0 0
        %1065 = vmatprep.subr.bf16.mxu0 0
        %1066 = vmatpush1.bf16.msra.mxu0 0
        %1067 = vmatprep.subr.bf16.mxu0 0
        %1068 = vmatpush1.bf16.msra.mxu0 0
        %1069 = vmatprep.mubr.bf16.mxu0 0
        %1070 = vmatmul.mubr.bf16.gmra.mrb[0].mxu0 %v397
        %v1071 = vpop.f32.mrb[0].mxu0
        %v1072 = vadd.f32 %v1031, %v1071
        %v1073 = vpop.f32.mrb[0].mxu0
        %v1074 = vadd.f32 %v1033, %v1073
        %v1075 = vpop.f32.mrb[0].mxu0
        %v1076 = vpop.f32.mrb[0].mxu0
        %1077 = vdwg.mxu0
        %1078 = vmatprep.subr.bf16.mxu0 %v807
        %1079 = vmatpush1.bf16.msra.mxu0 %v806
        %1080 = vmatprep.subr.bf16.mxu0 %v811
        %1081 = vmatpush1.bf16.msra.mxu0 %v810
        %1082 = vmatprep.subr.bf16.mxu0 %v815
        %1083 = vmatpush1.bf16.msra.mxu0 %v814
        %1084 = vmatprep.subr.bf16.mxu0 %v819
        %1085 = vmatpush1.bf16.msra.mxu0 %v818
        %1086 = vmatprep.subr.bf16.mxu0 %v823
        %1087 = vmatpush1.bf16.msra.mxu0 %v822
        %1088 = vmatprep.subr.bf16.mxu0 %v827
        %1089 = vmatpush1.bf16.msra.mxu0 %v826
        %1090 = vmatprep.subr.bf16.mxu0 %v831
        %1091 = vmatpush1.bf16.msra.mxu0 %v830
        %1092 = vmatprep.subr.bf16.mxu0 %v835
        %1093 = vmatpush1.bf16.msra.mxu0 %v834
        %1094 = vmatprep.subr.bf16.mxu0 %v839
        %1095 = vmatpush1.bf16.msra.mxu0 %v838
        %1096 = vmatprep.subr.bf16.mxu0 %v843
        %1097 = vmatpush1.bf16.msra.mxu0 %v842
        %1098 = vmatprep.subr.bf16.mxu0 %v847
        %1099 = vmatpush1.bf16.msra.mxu0 %v846
        %1100 = vmatprep.subr.bf16.mxu0 %v851
        %1101 = vmatpush1.bf16.msra.mxu0 %v850
        %1102 = vmatprep.subr.bf16.mxu0 %v855
        %1103 = vmatpush1.bf16.msra.mxu0 %v854
        %1104 = vmatprep.subr.bf16.mxu0 %v859
        %1105 = vmatpush1.bf16.msra.mxu0 %v858
        %1106 = vmatprep.subr.bf16.mxu0 %v863
        %1107 = vmatpush1.bf16.msra.mxu0 %v862
        %1108 = vmatprep.subr.bf16.mxu0 %v867
        %1109 = vmatpush1.bf16.msra.mxu0 %v866
        %1110 = vmatprep.mubr.bf16.mxu0 %v396
        %1111 = vmatmul.mubr.bf16.gmra.mrb[0].mxu0 %v395
        %v1112 = vpop.f32.mrb[0].mxu0
        %v1113 = vadd.f32 %v507, %v1112
        %v1114 = vpop.f32.mrb[0].mxu0
        %v1115 = vadd.f32 %v511, %v1114
        %v1116 = vpop.f32.mrb[0].mxu0
        %v1117 = vpop.f32.mrb[0].mxu0
        %1118 = vdwg.mxu0
        %1119 = vmatprep.subr.bf16.mxu0 %v871
        %1120 = vmatpush1.bf16.msra.mxu0 %v870
        %1121 = vmatprep.subr.bf16.mxu0 %v875
        %1122 = vmatpush1.bf16.msra.mxu0 %v874
        %1123 = vmatprep.subr.bf16.mxu0 %v879
        %1124 = vmatpush1.bf16.msra.mxu0 %v878
        %1125 = vmatprep.subr.bf16.mxu0 %v883
        %1126 = vmatpush1.bf16.msra.mxu0 %v882
        %1127 = vmatprep.subr.bf16.mxu0 %v887
        %1128 = vmatpush1.bf16.msra.mxu0 %v886
        %1129 = vmatprep.subr.bf16.mxu0 %v891
        %1130 = vmatpush1.bf16.msra.mxu0 %v890
        %1131 = vmatprep.subr.bf16.mxu0 %v895
        %1132 = vmatpush1.bf16.msra.mxu0 %v894
        %1133 = vmatprep.subr.bf16.mxu0 %v899
        %1134 = vmatpush1.bf16.msra.mxu0 %v898
        %1135 = vmatprep.subr.bf16.mxu0 0
        %1136 = vmatpush1.bf16.msra.mxu0 0
        %1137 = vmatprep.subr.bf16.mxu0 0
        %1138 = vmatpush1.bf16.msra.mxu0 0
        %1139 = vmatprep.subr.bf16.mxu0 0
        %1140 = vmatpush1.bf16.msra.mxu0 0
        %1141 = vmatprep.subr.bf16.mxu0 0
        %1142 = vmatpush1.bf16.msra.mxu0 0
        %1143 = vmatprep.subr.bf16.mxu0 0
        %1144 = vmatpush1.bf16.msra.mxu0 0
        %1145 = vmatprep.subr.bf16.mxu0 0
        %1146 = vmatpush1.bf16.msra.mxu0 0
        %1147 = vmatprep.subr.bf16.mxu0 0
        %1148 = vmatpush1.bf16.msra.mxu0 0
        %1149 = vmatprep.subr.bf16.mxu0 0
        %1150 = vmatpush1.bf16.msra.mxu0 0
        %1151 = vmatprep.mubr.bf16.mxu0 0
        %1152 = vmatmul.mubr.bf16.gmra.mrb[0].mxu0 %v397
        %v1153 = vpop.f32.mrb[0].mxu0
        %v1154 = vadd.f32 %v1113, %v1153
        %v1155 = vpop.f32.mrb[0].mxu0
        %v1156 = vadd.f32 %v1115, %v1155
        %v1157 = vpop.f32.mrb[0].mxu0
        %v1158 = vpop.f32.mrb[0].mxu0
        %1159 = vdwg.mxu0
        %v1160 = vmax.f32 %v1072, 0.0
        %v1161 = vmax.f32 %v1074, 0.0
        %v1162 = vmax.f32 %v1154, 0.0
        %v1163 = vmax.f32 %v1156, 0.0
        %v1164 = vld [vmem:[#allocation2] sm:$0xff]
        %v1165 = vld [vmem:[#allocation2 + $0x8] sm:$0xff]
        %v1166 = vld [vmem:[#allocation2 + $0x10] sm:$0xff]
        %v1167 = vpack.c.bf16 %v1160, %v1160
        %v1168 = vpack.c.bf16 %v1161, %v1161
        %v1169 = vpack.c.bf16 %v1162, %v1162
        %v1170 = vpack.c.bf16 %v1163, %v1163
        %v1171 = vld [vmem:[%s335] sm:$0xff]
        %v1172 = vld [vmem:[%s335 + $0x8] sm:$0xf]
        %v1173 = vld [vmem:[%s335 + $0xc] sm:$0xff]
        %v1174 = vld [vmem:[%s335 + $0x14] sm:$0xf]
        %v1175 = vld [vmem:[%s335 + $0x18] sm:$0xff]
        %v1176 = vld [vmem:[%s335 + $0x20] sm:$0xf]
        %v1177 = vld [vmem:[%s335 + $0x24] sm:$0xff]
        %v1178 = vld [vmem:[%s335 + $0x2c] sm:$0xf]
        %v1179 = vld [vmem:[%s335 + $0x30] sm:$0xff]
        %v1180 = vld [vmem:[%s335 + $0x38] sm:$0xf]
        %v1181 = vld [vmem:[%s335 + $0x3c] sm:$0xff]
        %v1182 = vld [vmem:[%s335 + $0x44] sm:$0xf]
        %v1183 = vld [vmem:[%s335 + $0x48] sm:$0xff]
        %v1184 = vld [vmem:[%s335 + $0x50] sm:$0xf]
        %v1185 = vld [vmem:[%s335 + $0x54] sm:$0xff]
        %v1186 = vld [vmem:[%s335 + $0x5c] sm:$0xf]
        %v1187 = vld [vmem:[%s335 + $0x60] sm:$0xff]
        %v1188 = vld [vmem:[%s335 + $0x68] sm:$0xf]
        %v1189 = vld [vmem:[%s335 + $0x6c] sm:$0xff]
        %v1190 = vld [vmem:[%s335 + $0x74] sm:$0xf]
        %v1191 = vld [vmem:[%s335 + $0x78] sm:$0xff]
        %v1192 = vld [vmem:[%s335 + $0x80] sm:$0xf]
        %v1193 = vld [vmem:[%s335 + $0x84] sm:$0xff]
        %v1194 = vld [vmem:[%s335 + $0x8c] sm:$0xf]
        %v1195 = vld [vmem:[%s335 + $0x90] sm:$0xff]
        %v1196 = vld [vmem:[%s335 + $0x98] sm:$0xf]
        %v1197 = vld [vmem:[%s335 + $0x9c] sm:$0xff]
        %v1198 = vld [vmem:[%s335 + $0xa4] sm:$0xf]
        %v1199 = vld [vmem:[%s335 + $0xa8] sm:$0xff]
        %v1200 = vld [vmem:[%s335 + $0xb0] sm:$0xf]
        %v1201 = vld [vmem:[%s335 + $0xb4] sm:$0xff]
        %v1202 = vld [vmem:[%s335 + $0xbc] sm:$0xf]
        %v1203 = vld [vmem:[%s335 + $0xc0] sm:$0xff]
        %v1204 = vld [vmem:[%s335 + $0xc8] sm:$0xf]
        %v1205 = vld [vmem:[%s335 + $0xcc] sm:$0xff]
        %v1206 = vld [vmem:[%s335 + $0xd4] sm:$0xf]
        %v1207 = vld [vmem:[%s335 + $0xd8] sm:$0xff]
        %v1208 = vld [vmem:[%s335 + $0xe0] sm:$0xf]
        %v1209 = vld [vmem:[%s335 + $0xe4] sm:$0xff]
        %v1210 = vld [vmem:[%s335 + $0xec] sm:$0xf]
        %v1211 = vld [vmem:[%s335 + $0xf0] sm:$0xff]
        %v1212 = vld [vmem:[%s335 + $0xf8] sm:$0xf]
        %v1213 = vld [vmem:[%s335 + $0xfc] sm:$0xff]
        %v1214 = vld [vmem:[%s335 + $0x104] sm:$0xf]
        %v1215 = vld [vmem:[%s335 + $0x108] sm:$0xff]
        %v1216 = vld [vmem:[%s335 + $0x110] sm:$0xf]
        %v1217 = vld [vmem:[%s335 + $0x114] sm:$0xff]
        %v1218 = vld [vmem:[%s335 + $0x11c] sm:$0xf]
        %v1219 = vld [vmem:[%s335 + $0x120] sm:$0xff]
        %v1220 = vld [vmem:[%s335 + $0x128] sm:$0xf]
        %v1221 = vld [vmem:[%s335 + $0x12c] sm:$0xff]
        %v1222 = vld [vmem:[%s335 + $0x134] sm:$0xf]
        %v1223 = vld [vmem:[%s335 + $0x138] sm:$0xff]
        %v1224 = vld [vmem:[%s335 + $0x140] sm:$0xf]
        %v1225 = vld [vmem:[%s335 + $0x144] sm:$0xff]
        %v1226 = vld [vmem:[%s335 + $0x14c] sm:$0xf]
        %v1227 = vld [vmem:[%s335 + $0x150] sm:$0xff]
        %v1228 = vld [vmem:[%s335 + $0x158] sm:$0xf]
        %v1229 = vld [vmem:[%s335 + $0x15c] sm:$0xff]
        %v1230 = vld [vmem:[%s335 + $0x164] sm:$0xf]
        %v1231 = vld [vmem:[%s335 + $0x168] sm:$0xff]
        %v1232 = vld [vmem:[%s335 + $0x170] sm:$0xf]
        %v1233 = vld [vmem:[%s335 + $0x174] sm:$0xff]
        %v1234 = vld [vmem:[%s335 + $0x17c] sm:$0xf]
        %v1235 = vld [vmem:[%s335 + $0x180] sm:$0xff]
        %v1236 = vld [vmem:[%s335 + $0x188] sm:$0xf]
        %v1237 = vld [vmem:[%s335 + $0x18c] sm:$0xff]
        %v1238 = vld [vmem:[%s335 + $0x194] sm:$0xf]
        %v1239 = vld [vmem:[%s335 + $0x198] sm:$0xff]
        %v1240 = vld [vmem:[%s335 + $0x1a0] sm:$0xf]
        %v1241 = vld [vmem:[%s335 + $0x1a4] sm:$0xff]
        %v1242 = vld [vmem:[%s335 + $0x1ac] sm:$0xf]
        %v1243 = vld [vmem:[%s335 + $0x1b0] sm:$0xff]
        %v1244 = vld [vmem:[%s335 + $0x1b8] sm:$0xf]
        %v1245 = vld [vmem:[%s335 + $0x1bc] sm:$0xff]
        %v1246 = vld [vmem:[%s335 + $0x1c4] sm:$0xf]
        %v1247 = vld [vmem:[%s335 + $0x1c8] sm:$0xff]
        %v1248 = vld [vmem:[%s335 + $0x1d0] sm:$0xf]
        %v1249 = vld [vmem:[%s335 + $0x1d4] sm:$0xff]
        %v1250 = vld [vmem:[%s335 + $0x1dc] sm:$0xf]
        %v1251 = vld [vmem:[%s335 + $0x1e0] sm:$0xff]
        %v1252 = vld [vmem:[%s335 + $0x1e8] sm:$0xf]
        %v1253 = vld [vmem:[%s335 + $0x1ec] sm:$0xff]
        %v1254 = vld [vmem:[%s335 + $0x1f4] sm:$0xf]
        %v1255 = vld [vmem:[%s335 + $0x1f8] sm:$0xff]
        %v1256 = vld [vmem:[%s335 + $0x200] sm:$0xf]
        %v1257 = vld [vmem:[%s335 + $0x204] sm:$0xff]
        %v1258 = vld [vmem:[%s335 + $0x20c] sm:$0xf]
        %v1259 = vld [vmem:[%s335 + $0x210] sm:$0xff]
        %v1260 = vld [vmem:[%s335 + $0x218] sm:$0xf]
        %v1261 = vld [vmem:[%s335 + $0x21c] sm:$0xff]
        %v1262 = vld [vmem:[%s335 + $0x224] sm:$0xf]
        %v1263 = vld [vmem:[%s335 + $0x228] sm:$0xff]
        %v1264 = vld [vmem:[%s335 + $0x230] sm:$0xf]
        %v1265 = vld [vmem:[%s335 + $0x234] sm:$0xff]
        %v1266 = vld [vmem:[%s335 + $0x23c] sm:$0xf]
        %v1267 = vld [vmem:[%s335 + $0x240] sm:$0xff]
        %v1268 = vld [vmem:[%s335 + $0x248] sm:$0xf]
        %v1269 = vld [vmem:[%s335 + $0x24c] sm:$0xff]
        %v1270 = vld [vmem:[%s335 + $0x254] sm:$0xf]
        %v1271 = vld [vmem:[%s335 + $0x258] sm:$0xff]
        %v1272 = vld [vmem:[%s335 + $0x260] sm:$0xf]
        %v1273 = vld [vmem:[%s335 + $0x264] sm:$0xff]
        %v1274 = vld [vmem:[%s335 + $0x26c] sm:$0xf]
        %v1275 = vld [vmem:[%s335 + $0x270] sm:$0xff]
        %v1276 = vld [vmem:[%s335 + $0x278] sm:$0xf]
        %v1277 = vld [vmem:[%s335 + $0x27c] sm:$0xff]
        %v1278 = vld [vmem:[%s335 + $0x284] sm:$0xf]
        %v1279 = vld [vmem:[%s335 + $0x288] sm:$0xff]
        %v1280 = vld [vmem:[%s335 + $0x290] sm:$0xf]
        %v1281 = vld [vmem:[%s335 + $0x294] sm:$0xff]
        %v1282 = vld [vmem:[%s335 + $0x29c] sm:$0xf]
        %v1283 = vld [vmem:[%s335 + $0x2a0] sm:$0xff]
        %v1284 = vld [vmem:[%s335 + $0x2a8] sm:$0xf]
        %v1285 = vld [vmem:[%s335 + $0x2ac] sm:$0xff]
        %v1286 = vld [vmem:[%s335 + $0x2b4] sm:$0xf]
        %v1287 = vld [vmem:[%s335 + $0x2b8] sm:$0xff]
        %v1288 = vld [vmem:[%s335 + $0x2c0] sm:$0xf]
        %v1289 = vld [vmem:[%s335 + $0x2c4] sm:$0xff]
        %v1290 = vld [vmem:[%s335 + $0x2cc] sm:$0xf]
        %v1291 = vld [vmem:[%s335 + $0x2d0] sm:$0xff]
        %v1292 = vld [vmem:[%s335 + $0x2d8] sm:$0xf]
        %v1293 = vld [vmem:[%s335 + $0x2dc] sm:$0xff]
        %v1294 = vld [vmem:[%s335 + $0x2e4] sm:$0xf]
        %v1295 = vld [vmem:[%s335 + $0x2e8] sm:$0xff]
        %v1296 = vld [vmem:[%s335 + $0x2f0] sm:$0xf]
        %v1297 = vld [vmem:[%s335 + $0x2f4] sm:$0xff]
        %v1298 = vld [vmem:[%s335 + $0x2fc] sm:$0xf]
        %v1427 = vunpack.c.l.b16 %v1171
        %v1428 = vunpack.c.h.b16 %v1171
        %v1429 = vunpack.c.l.b16 %v1172
        %v1430 = vunpack.c.l.b16 %v1173
        %v1431 = vunpack.c.h.b16 %v1173
        %v1432 = vunpack.c.l.b16 %v1174
        %v1433 = vunpack.c.l.b16 %v1175
        %v1434 = vunpack.c.h.b16 %v1175
        %v1435 = vunpack.c.l.b16 %v1176
        %v1436 = vunpack.c.l.b16 %v1177
        %v1437 = vunpack.c.h.b16 %v1177
        %v1438 = vunpack.c.l.b16 %v1178
        %v1439 = vunpack.c.l.b16 %v1179
        %v1440 = vunpack.c.h.b16 %v1179
        %v1441 = vunpack.c.l.b16 %v1180
        %v1442 = vunpack.c.l.b16 %v1181
        %v1443 = vunpack.c.h.b16 %v1181
        %v1444 = vunpack.c.l.b16 %v1182
        %v1445 = vunpack.c.l.b16 %v1183
        %v1446 = vunpack.c.h.b16 %v1183
        %v1447 = vunpack.c.l.b16 %v1184
        %v1448 = vunpack.c.l.b16 %v1185
        %v1449 = vunpack.c.h.b16 %v1185
        %v1450 = vunpack.c.l.b16 %v1186
        %v1451 = vunpack.c.l.b16 %v1187
        %v1452 = vunpack.c.h.b16 %v1187
        %v1453 = vunpack.c.l.b16 %v1188
        %v1454 = vunpack.c.l.b16 %v1189
        %v1455 = vunpack.c.h.b16 %v1189
        %v1456 = vunpack.c.l.b16 %v1190
        %v1457 = vunpack.c.l.b16 %v1191
        %v1458 = vunpack.c.h.b16 %v1191
        %v1459 = vunpack.c.l.b16 %v1192
        %v1460 = vunpack.c.l.b16 %v1193
        %v1461 = vunpack.c.h.b16 %v1193
        %v1462 = vunpack.c.l.b16 %v1194
        %v1463 = vunpack.c.l.b16 %v1195
        %v1464 = vunpack.c.h.b16 %v1195
        %v1465 = vunpack.c.l.b16 %v1196
        %v1466 = vunpack.c.l.b16 %v1197
        %v1467 = vunpack.c.h.b16 %v1197
        %v1468 = vunpack.c.l.b16 %v1198
        %v1469 = vunpack.c.l.b16 %v1199
        %v1470 = vunpack.c.h.b16 %v1199
        %v1471 = vunpack.c.l.b16 %v1200
        %v1472 = vunpack.c.l.b16 %v1201
        %v1473 = vunpack.c.h.b16 %v1201
        %v1474 = vunpack.c.l.b16 %v1202
        %v1475 = vunpack.c.l.b16 %v1203
        %v1476 = vunpack.c.h.b16 %v1203
        %v1477 = vunpack.c.l.b16 %v1204
        %v1478 = vunpack.c.l.b16 %v1205
        %v1479 = vunpack.c.h.b16 %v1205
        %v1480 = vunpack.c.l.b16 %v1206
        %v1481 = vunpack.c.l.b16 %v1207
        %v1482 = vunpack.c.h.b16 %v1207
        %v1483 = vunpack.c.l.b16 %v1208
        %v1484 = vunpack.c.l.b16 %v1209
        %v1485 = vunpack.c.h.b16 %v1209
        %v1486 = vunpack.c.l.b16 %v1210
        %v1487 = vunpack.c.l.b16 %v1211
        %v1488 = vunpack.c.h.b16 %v1211
        %v1489 = vunpack.c.l.b16 %v1212
        %v1490 = vunpack.c.l.b16 %v1213
        %v1491 = vunpack.c.h.b16 %v1213
        %v1492 = vunpack.c.l.b16 %v1214
        %v1493 = vunpack.c.l.b16 %v1215
        %v1494 = vunpack.c.h.b16 %v1215
        %v1495 = vunpack.c.l.b16 %v1216
        %v1496 = vunpack.c.l.b16 %v1217
        %v1497 = vunpack.c.h.b16 %v1217
        %v1498 = vunpack.c.l.b16 %v1218
        %v1499 = vunpack.c.l.b16 %v1219
        %v1500 = vunpack.c.h.b16 %v1219
        %v1501 = vunpack.c.l.b16 %v1220
        %v1502 = vunpack.c.l.b16 %v1221
        %v1503 = vunpack.c.h.b16 %v1221
        %v1504 = vunpack.c.l.b16 %v1222
        %v1505 = vunpack.c.l.b16 %v1223
        %v1506 = vunpack.c.h.b16 %v1223
        %v1507 = vunpack.c.l.b16 %v1224
        %v1508 = vunpack.c.l.b16 %v1225
        %v1509 = vunpack.c.h.b16 %v1225
        %v1510 = vunpack.c.l.b16 %v1226
        %v1511 = vunpack.c.l.b16 %v1227
        %v1512 = vunpack.c.h.b16 %v1227
        %v1513 = vunpack.c.l.b16 %v1228
        %v1514 = vunpack.c.l.b16 %v1229
        %v1515 = vunpack.c.h.b16 %v1229
        %v1516 = vunpack.c.l.b16 %v1230
        %v1517 = vunpack.c.l.b16 %v1231
        %v1518 = vunpack.c.h.b16 %v1231
        %v1519 = vunpack.c.l.b16 %v1232
        %v1520 = vunpack.c.l.b16 %v1233
        %v1521 = vunpack.c.h.b16 %v1233
        %v1522 = vunpack.c.l.b16 %v1234
        %v1523 = vunpack.c.l.b16 %v1235
        %v1524 = vunpack.c.h.b16 %v1235
        %v1525 = vunpack.c.l.b16 %v1236
        %v1526 = vunpack.c.l.b16 %v1237
        %v1527 = vunpack.c.h.b16 %v1237
        %v1528 = vunpack.c.l.b16 %v1238
        %v1529 = vunpack.c.l.b16 %v1239
        %v1530 = vunpack.c.h.b16 %v1239
        %v1531 = vunpack.c.l.b16 %v1240
        %v1532 = vunpack.c.l.b16 %v1241
        %v1533 = vunpack.c.h.b16 %v1241
        %v1534 = vunpack.c.l.b16 %v1242
        %v1535 = vunpack.c.l.b16 %v1243
        %v1536 = vunpack.c.h.b16 %v1243
        %v1537 = vunpack.c.l.b16 %v1244
        %v1538 = vunpack.c.l.b16 %v1245
        %v1539 = vunpack.c.h.b16 %v1245
        %v1540 = vunpack.c.l.b16 %v1246
        %v1541 = vunpack.c.l.b16 %v1247
        %v1542 = vunpack.c.h.b16 %v1247
        %v1543 = vunpack.c.l.b16 %v1248
        %v1544 = vunpack.c.l.b16 %v1249
        %v1545 = vunpack.c.h.b16 %v1249
        %v1546 = vunpack.c.l.b16 %v1250
        %v1547 = vunpack.c.l.b16 %v1251
        %v1548 = vunpack.c.h.b16 %v1251
        %v1549 = vunpack.c.l.b16 %v1252
        %v1550 = vunpack.c.l.b16 %v1253
        %v1551 = vunpack.c.h.b16 %v1253
        %v1552 = vunpack.c.l.b16 %v1254
        %v1553 = vunpack.c.l.b16 %v1255
        %v1554 = vunpack.c.h.b16 %v1255
        %v1555 = vunpack.c.l.b16 %v1256
        %v1556 = vunpack.c.l.b16 %v1257
        %v1557 = vunpack.c.h.b16 %v1257
        %v1558 = vunpack.c.l.b16 %v1258
        %v1559 = vunpack.c.l.b16 %v1259
        %v1560 = vunpack.c.h.b16 %v1259
        %v1561 = vunpack.c.l.b16 %v1260
        %v1562 = vunpack.c.l.b16 %v1261
        %v1563 = vunpack.c.h.b16 %v1261
        %v1564 = vunpack.c.l.b16 %v1262
        %v1565 = vunpack.c.l.b16 %v1263
        %v1566 = vunpack.c.h.b16 %v1263
        %v1567 = vunpack.c.l.b16 %v1264
        %v1568 = vunpack.c.l.b16 %v1265
        %v1569 = vunpack.c.h.b16 %v1265
        %v1570 = vunpack.c.l.b16 %v1266
        %v1571 = vunpack.c.l.b16 %v1267
        %v1572 = vunpack.c.h.b16 %v1267
        %v1573 = vunpack.c.l.b16 %v1268
        %v1574 = vunpack.c.l.b16 %v1269
        %v1575 = vunpack.c.h.b16 %v1269
        %v1576 = vunpack.c.l.b16 %v1270
        %v1577 = vunpack.c.l.b16 %v1271
        %v1578 = vunpack.c.h.b16 %v1271
        %v1579 = vunpack.c.l.b16 %v1272
        %v1580 = vunpack.c.l.b16 %v1273
        %v1581 = vunpack.c.h.b16 %v1273
        %v1582 = vunpack.c.l.b16 %v1274
        %v1583 = vunpack.c.l.b16 %v1275
        %v1584 = vunpack.c.h.b16 %v1275
        %v1585 = vunpack.c.l.b16 %v1276
        %v1586 = vunpack.c.l.b16 %v1277
        %v1587 = vunpack.c.h.b16 %v1277
        %v1588 = vunpack.c.l.b16 %v1278
        %v1589 = vunpack.c.l.b16 %v1279
        %v1590 = vunpack.c.h.b16 %v1279
        %v1591 = vunpack.c.l.b16 %v1280
        %v1592 = vunpack.c.l.b16 %v1281
        %v1593 = vunpack.c.h.b16 %v1281
        %v1594 = vunpack.c.l.b16 %v1282
        %v1595 = vunpack.c.l.b16 %v1283
        %v1596 = vunpack.c.h.b16 %v1283
        %v1597 = vunpack.c.l.b16 %v1284
        %v1598 = vunpack.c.l.b16 %v1285
        %v1599 = vunpack.c.h.b16 %v1285
        %v1600 = vunpack.c.l.b16 %v1286
        %v1601 = vunpack.c.l.b16 %v1287
        %v1602 = vunpack.c.h.b16 %v1287
        %v1603 = vunpack.c.l.b16 %v1288
        %v1604 = vunpack.c.l.b16 %v1289
        %v1605 = vunpack.c.h.b16 %v1289
        %v1606 = vunpack.c.l.b16 %v1290
        %v1607 = vunpack.c.l.b16 %v1291
        %v1608 = vunpack.c.h.b16 %v1291
        %v1609 = vunpack.c.l.b16 %v1292
        %v1610 = vunpack.c.l.b16 %v1293
        %v1611 = vunpack.c.h.b16 %v1293
        %v1612 = vunpack.c.l.b16 %v1294
        %v1613 = vunpack.c.l.b16 %v1295
        %v1614 = vunpack.c.h.b16 %v1295
        %v1615 = vunpack.c.l.b16 %v1296
        %v1616 = vunpack.c.l.b16 %v1297
        %v1617 = vunpack.c.h.b16 %v1297
        %v1618 = vunpack.c.l.b16 %v1298
        %v1619 = vpack.c.b16 %v1430, %v1427
        %v1620 = vpack.c.b16 %v1431, %v1428
        %v1621 = vpack.c.b16 %v1432, %v1429
        %v1622 = vpack.c.b16 %v1436, %v1433
        %v1623 = vpack.c.b16 %v1437, %v1434
        %v1624 = vpack.c.b16 %v1438, %v1435
        %v1625 = vpack.c.b16 %v1442, %v1439
        %v1626 = vpack.c.b16 %v1443, %v1440
        %v1627 = vpack.c.b16 %v1444, %v1441
        %v1628 = vpack.c.b16 %v1448, %v1445
        %v1629 = vpack.c.b16 %v1449, %v1446
        %v1630 = vpack.c.b16 %v1450, %v1447
        %v1631 = vpack.c.b16 %v1454, %v1451
        %v1632 = vpack.c.b16 %v1455, %v1452
        %v1633 = vpack.c.b16 %v1456, %v1453
        %v1634 = vpack.c.b16 %v1460, %v1457
        %v1635 = vpack.c.b16 %v1461, %v1458
        %v1636 = vpack.c.b16 %v1462, %v1459
        %v1637 = vpack.c.b16 %v1466, %v1463
        %v1638 = vpack.c.b16 %v1467, %v1464
        %v1639 = vpack.c.b16 %v1468, %v1465
        %v1640 = vpack.c.b16 %v1472, %v1469
        %v1641 = vpack.c.b16 %v1473, %v1470
        %v1642 = vpack.c.b16 %v1474, %v1471
        %v1643 = vpack.c.b16 %v1478, %v1475
        %v1644 = vpack.c.b16 %v1479, %v1476
        %v1645 = vpack.c.b16 %v1480, %v1477
        %v1646 = vpack.c.b16 %v1484, %v1481
        %v1647 = vpack.c.b16 %v1485, %v1482
        %v1648 = vpack.c.b16 %v1486, %v1483
        %v1649 = vpack.c.b16 %v1490, %v1487
        %v1650 = vpack.c.b16 %v1491, %v1488
        %v1651 = vpack.c.b16 %v1492, %v1489
        %v1652 = vpack.c.b16 %v1496, %v1493
        %v1653 = vpack.c.b16 %v1497, %v1494
        %v1654 = vpack.c.b16 %v1498, %v1495
        %v1655 = vpack.c.b16 %v1502, %v1499
        %v1656 = vpack.c.b16 %v1503, %v1500
        %v1657 = vpack.c.b16 %v1504, %v1501
        %v1658 = vpack.c.b16 %v1508, %v1505
        %v1659 = vpack.c.b16 %v1509, %v1506
        %v1660 = vpack.c.b16 %v1510, %v1507
        %v1661 = vpack.c.b16 %v1514, %v1511
        %v1662 = vpack.c.b16 %v1515, %v1512
        %v1663 = vpack.c.b16 %v1516, %v1513
        %v1664 = vpack.c.b16 %v1520, %v1517
        %v1665 = vpack.c.b16 %v1521, %v1518
        %v1666 = vpack.c.b16 %v1522, %v1519
        %v1667 = vpack.c.b16 %v1526, %v1523
        %v1668 = vpack.c.b16 %v1527, %v1524
        %v1669 = vpack.c.b16 %v1528, %v1525
        %v1670 = vpack.c.b16 %v1532, %v1529
        %v1671 = vpack.c.b16 %v1533, %v1530
        %v1672 = vpack.c.b16 %v1534, %v1531
        %v1673 = vpack.c.b16 %v1538, %v1535
        %v1674 = vpack.c.b16 %v1539, %v1536
        %v1675 = vpack.c.b16 %v1540, %v1537
        %v1676 = vpack.c.b16 %v1544, %v1541
        %v1677 = vpack.c.b16 %v1545, %v1542
        %v1678 = vpack.c.b16 %v1546, %v1543
        %v1679 = vpack.c.b16 %v1550, %v1547
        %v1680 = vpack.c.b16 %v1551, %v1548
        %v1681 = vpack.c.b16 %v1552, %v1549
        %v1682 = vpack.c.b16 %v1556, %v1553
        %v1683 = vpack.c.b16 %v1557, %v1554
        %v1684 = vpack.c.b16 %v1558, %v1555
        %v1685 = vpack.c.b16 %v1562, %v1559
        %v1686 = vpack.c.b16 %v1563, %v1560
        %v1687 = vpack.c.b16 %v1564, %v1561
        %v1688 = vpack.c.b16 %v1568, %v1565
        %v1689 = vpack.c.b16 %v1569, %v1566
        %v1690 = vpack.c.b16 %v1570, %v1567
        %v1691 = vpack.c.b16 %v1574, %v1571
        %v1692 = vpack.c.b16 %v1575, %v1572
        %v1693 = vpack.c.b16 %v1576, %v1573
        %v1694 = vpack.c.b16 %v1580, %v1577
        %v1695 = vpack.c.b16 %v1581, %v1578
        %v1696 = vpack.c.b16 %v1582, %v1579
        %v1697 = vpack.c.b16 %v1586, %v1583
        %v1698 = vpack.c.b16 %v1587, %v1584
        %v1699 = vpack.c.b16 %v1588, %v1585
        %v1700 = vpack.c.b16 %v1592, %v1589
        %v1701 = vpack.c.b16 %v1593, %v1590
        %v1702 = vpack.c.b16 %v1594, %v1591
        %v1703 = vpack.c.b16 %v1598, %v1595
        %v1704 = vpack.c.b16 %v1599, %v1596
        %v1705 = vpack.c.b16 %v1600, %v1597
        %v1706 = vpack.c.b16 %v1604, %v1601
        %v1707 = vpack.c.b16 %v1605, %v1602
        %v1708 = vpack.c.b16 %v1606, %v1603
        %v1709 = vpack.c.b16 %v1610, %v1607
        %v1710 = vpack.c.b16 %v1611, %v1608
        %v1711 = vpack.c.b16 %v1612, %v1609
        %v1712 = vpack.c.b16 %v1616, %v1613
        %v1713 = vpack.c.b16 %v1617, %v1614
        %v1714 = vpack.c.b16 %v1618, %v1615
        %1811 = vmatprep.subr.bf16.mxu0 %v1620
        %1812 = vmatpush1.bf16.msra.mxu0 %v1619
        %1813 = vmatprep.subr.bf16.mxu0 %v1623
        %1814 = vmatpush1.bf16.msra.mxu0 %v1622
        %1815 = vmatprep.subr.bf16.mxu0 %v1626
        %1816 = vmatpush1.bf16.msra.mxu0 %v1625
        %1817 = vmatprep.subr.bf16.mxu0 %v1629
        %1818 = vmatpush1.bf16.msra.mxu0 %v1628
        %1819 = vmatprep.subr.bf16.mxu0 %v1632
        %1820 = vmatpush1.bf16.msra.mxu0 %v1631
        %1821 = vmatprep.subr.bf16.mxu0 %v1635
        %1822 = vmatpush1.bf16.msra.mxu0 %v1634
        %1823 = vmatprep.subr.bf16.mxu0 %v1638
        %1824 = vmatpush1.bf16.msra.mxu0 %v1637
        %1825 = vmatprep.subr.bf16.mxu0 %v1641
        %1826 = vmatpush1.bf16.msra.mxu0 %v1640
        %1827 = vmatprep.subr.bf16.mxu0 %v1644
        %1828 = vmatpush1.bf16.msra.mxu0 %v1643
        %1829 = vmatprep.subr.bf16.mxu0 %v1647
        %1830 = vmatpush1.bf16.msra.mxu0 %v1646
        %1831 = vmatprep.subr.bf16.mxu0 %v1650
        %1832 = vmatpush1.bf16.msra.mxu0 %v1649
        %1833 = vmatprep.subr.bf16.mxu0 %v1653
        %1834 = vmatpush1.bf16.msra.mxu0 %v1652
        %1835 = vmatprep.subr.bf16.mxu0 %v1656
        %1836 = vmatpush1.bf16.msra.mxu0 %v1655
        %1837 = vmatprep.subr.bf16.mxu0 %v1659
        %1838 = vmatpush1.bf16.msra.mxu0 %v1658
        %1839 = vmatprep.subr.bf16.mxu0 %v1662
        %1840 = vmatpush1.bf16.msra.mxu0 %v1661
        %1841 = vmatprep.subr.bf16.mxu0 %v1665
        %1842 = vmatpush1.bf16.msra.mxu0 %v1664
        %1843 = vmatprep.mubr.bf16.mxu0 %v1168
        %1844 = vmatmul.mubr.bf16.gmra.mrb[0].mxu0 %v1167
        %v1845 = vpop.f32.mrb[0].mxu0
        %v1846 = vadd.f32 0.0, %v1845
        %v1847 = vpop.f32.mrb[0].mxu0
        %v1848 = vadd.f32 0.0, %v1847
        %v1849 = vpop.f32.mrb[0].mxu0
        %v1850 = vpop.f32.mrb[0].mxu0
        %1851 = vdwg.mxu0
        %1852 = vmatprep.subr.bf16.mxu0 %v1668
        %1853 = vmatpush1.bf16.msra.mxu0 %v1667
        %1854 = vmatprep.subr.bf16.mxu0 %v1671
        %1855 = vmatpush1.bf16.msra.mxu0 %v1670
        %1856 = vmatprep.subr.bf16.mxu0 %v1674
        %1857 = vmatpush1.bf16.msra.mxu0 %v1673
        %1858 = vmatprep.subr.bf16.mxu0 %v1677
        %1859 = vmatpush1.bf16.msra.mxu0 %v1676
        %1860 = vmatprep.subr.bf16.mxu0 %v1680
        %1861 = vmatpush1.bf16.msra.mxu0 %v1679
        %1862 = vmatprep.subr.bf16.mxu0 %v1683
        %1863 = vmatpush1.bf16.msra.mxu0 %v1682
        %1864 = vmatprep.subr.bf16.mxu0 %v1686
        %1865 = vmatpush1.bf16.msra.mxu0 %v1685
        %1866 = vmatprep.subr.bf16.mxu0 %v1689
        %1867 = vmatpush1.bf16.msra.mxu0 %v1688
        %1868 = vmatprep.subr.bf16.mxu0 %v1692
        %1869 = vmatpush1.bf16.msra.mxu0 %v1691
        %1870 = vmatprep.subr.bf16.mxu0 %v1695
        %1871 = vmatpush1.bf16.msra.mxu0 %v1694
        %1872 = vmatprep.subr.bf16.mxu0 %v1698
        %1873 = vmatpush1.bf16.msra.mxu0 %v1697
        %1874 = vmatprep.subr.bf16.mxu0 %v1701
        %1875 = vmatpush1.bf16.msra.mxu0 %v1700
        %1876 = vmatprep.subr.bf16.mxu0 %v1704
        %1877 = vmatpush1.bf16.msra.mxu0 %v1703
        %1878 = vmatprep.subr.bf16.mxu0 %v1707
        %1879 = vmatpush1.bf16.msra.mxu0 %v1706
        %1880 = vmatprep.subr.bf16.mxu0 %v1710
        %1881 = vmatpush1.bf16.msra.mxu0 %v1709
        %1882 = vmatprep.subr.bf16.mxu0 %v1713
        %1883 = vmatpush1.bf16.msra.mxu0 %v1712
        %1884 = vmatprep.mubr.bf16.mxu0 %v1170
        %1885 = vmatmul.mubr.bf16.gmra.mrb[0].mxu0 %v1169
        %v1886 = vpop.f32.mrb[0].mxu0
        %v1887 = vadd.f32 %v1846, %v1886
        %v1888 = vpop.f32.mrb[0].mxu0
        %v1889 = vadd.f32 %v1848, %v1888
        %v1890 = vpop.f32.mrb[0].mxu0
        %v1891 = vpop.f32.mrb[0].mxu0
        %1892 = vdwg.mxu0
        %1893 = vmatprep.subr.bf16.mxu0 0
        %1894 = vmatpush1.bf16.msra.mxu0 %v1621
        %1895 = vmatprep.subr.bf16.mxu0 0
        %1896 = vmatpush1.bf16.msra.mxu0 %v1624
        %1897 = vmatprep.subr.bf16.mxu0 0
        %1898 = vmatpush1.bf16.msra.mxu0 %v1627
        %1899 = vmatprep.subr.bf16.mxu0 0
        %1900 = vmatpush1.bf16.msra.mxu0 %v1630
        %1901 = vmatprep.subr.bf16.mxu0 0
        %1902 = vmatpush1.bf16.msra.mxu0 %v1633
        %1903 = vmatprep.subr.bf16.mxu0 0
        %1904 = vmatpush1.bf16.msra.mxu0 %v1636
        %1905 = vmatprep.subr.bf16.mxu0 0
        %1906 = vmatpush1.bf16.msra.mxu0 %v1639
        %1907 = vmatprep.subr.bf16.mxu0 0
        %1908 = vmatpush1.bf16.msra.mxu0 %v1642
        %1909 = vmatprep.subr.bf16.mxu0 0
        %1910 = vmatpush1.bf16.msra.mxu0 %v1645
        %1911 = vmatprep.subr.bf16.mxu0 0
        %1912 = vmatpush1.bf16.msra.mxu0 %v1648
        %1913 = vmatprep.subr.bf16.mxu0 0
        %1914 = vmatpush1.bf16.msra.mxu0 %v1651
        %1915 = vmatprep.subr.bf16.mxu0 0
        %1916 = vmatpush1.bf16.msra.mxu0 %v1654
        %1917 = vmatprep.subr.bf16.mxu0 0
        %1918 = vmatpush1.bf16.msra.mxu0 %v1657
        %1919 = vmatprep.subr.bf16.mxu0 0
        %1920 = vmatpush1.bf16.msra.mxu0 %v1660
        %1921 = vmatprep.subr.bf16.mxu0 0
        %1922 = vmatpush1.bf16.msra.mxu0 %v1663
        %1923 = vmatprep.subr.bf16.mxu0 0
        %1924 = vmatpush1.bf16.msra.mxu0 %v1666
        %1925 = vmatprep.mubr.bf16.mxu0 %v1168
        %1926 = vmatmul.mubr.bf16.gmra.mrb[0].mxu0 %v1167
        %v1927 = vpop.f32.mrb[0].mxu0
        %v1928 = vadd.f32 0.0, %v1927
        %v1929 = vpop.f32.mrb[0].mxu0
        %v1930 = vpop.f32.mrb[0].mxu0
        %v1931 = vpop.f32.mrb[0].mxu0
        %1932 = vdwg.mxu0
        %1933 = vmatprep.subr.bf16.mxu0 0
        %1934 = vmatpush1.bf16.msra.mxu0 %v1669
        %1935 = vmatprep.subr.bf16.mxu0 0
        %1936 = vmatpush1.bf16.msra.mxu0 %v1672
        %1937 = vmatprep.subr.bf16.mxu0 0
        %1938 = vmatpush1.bf16.msra.mxu0 %v1675
        %1939 = vmatprep.subr.bf16.mxu0 0
        %1940 = vmatpush1.bf16.msra.mxu0 %v1678
        %1941 = vmatprep.subr.bf16.mxu0 0
        %1942 = vmatpush1.bf16.msra.mxu0 %v1681
        %1943 = vmatprep.subr.bf16.mxu0 0
        %1944 = vmatpush1.bf16.msra.mxu0 %v1684
        %1945 = vmatprep.subr.bf16.mxu0 0
        %1946 = vmatpush1.bf16.msra.mxu0 %v1687
        %1947 = vmatprep.subr.bf16.mxu0 0
        %1948 = vmatpush1.bf16.msra.mxu0 %v1690
        %1949 = vmatprep.subr.bf16.mxu0 0
        %1950 = vmatpush1.bf16.msra.mxu0 %v1693
        %1951 = vmatprep.subr.bf16.mxu0 0
        %1952 = vmatpush1.bf16.msra.mxu0 %v1696
        %1953 = vmatprep.subr.bf16.mxu0 0
        %1954 = vmatpush1.bf16.msra.mxu0 %v1699
        %1955 = vmatprep.subr.bf16.mxu0 0
        %1956 = vmatpush1.bf16.msra.mxu0 %v1702
        %1957 = vmatprep.subr.bf16.mxu0 0
        %1958 = vmatpush1.bf16.msra.mxu0 %v1705
        %1959 = vmatprep.subr.bf16.mxu0 0
        %1960 = vmatpush1.bf16.msra.mxu0 %v1708
        %1961 = vmatprep.subr.bf16.mxu0 0
        %1962 = vmatpush1.bf16.msra.mxu0 %v1711
        %1963 = vmatprep.subr.bf16.mxu0 0
        %1964 = vmatpush1.bf16.msra.mxu0 %v1714
        %1965 = vmatprep.mubr.bf16.mxu0 %v1170
        %1966 = vmatmul.mubr.bf16.gmra.mrb[0].mxu0 %v1169
        %v1967 = vpop.f32.mrb[0].mxu0
        %v1968 = vadd.f32 %v1928, %v1967
        %v1969 = vpop.f32.mrb[0].mxu0
        %v1970 = vpop.f32.mrb[0].mxu0
        %v1971 = vpop.f32.mrb[0].mxu0
        %1972 = vdwg.mxu0
        %v1973 = vadd.f32 %v1164, %v1887
        %v1974 = vadd.f32 %v1165, %v1889
        %v1975 = vadd.f32 %v1166, %v1968
        %1976 = vst [vmem:[#allocation2] sm:$0xff] %v1973
        %1977 = vst [vmem:[#allocation2 + $0x8] sm:$0xff] %v1974
        %1978 = vst [vmem:[#allocation2 + $0x10] sm:$0xff] %v1975
        %p1979 = scmp.eq.s32.totalorder %s33, 2
        // Predicated region
        $region65: #{tpu_custom_call.1} parent=39 // pred_check
          %p1980 = pneg %p1979
        $region66: #{tpu_custom_call.1} parent=39 // pred_check_branch
          %1982 = sbr.rel (%p1980) target = $region68
        $region67: #{tpu_custom_call.1} parent=39 // pred_region
          %v1983 = vld [vmem:[#allocation2] sm:$0xff]
          %v1984 = vld [vmem:[#allocation2 + $0x8] sm:$0xff]
          %v1985 = vld [vmem:[#allocation2 + $0x10] sm:$0xff]
          %v1986 = vld [vmem:[#allocation11] sm:$0x7]
          %v1988 = vlaneseq
          %v1989 = vshrl.u32 %v1988, 7
          %v1990 = vsub.s32 0, %v1989
          %v1991 = vrot.slane %v1986, %v1990
          %v1992 = vlaneseq
          %v1993 = vshrl.u32 %v1992, 7
          %v1994 = vsub.s32 1, %v1993
          %v1995 = vrot.slane %v1986, %v1994
          %v1996 = vlaneseq
          %v1997 = vshrl.u32 %v1996, 7
          %v1998 = vsub.s32 2, %v1997
          %v1999 = vrot.slane %v1986, %v1998
          %v2003 = vadd.f32 %v1983, %v1991
          %v2004 = vadd.f32 %v1984, %v1995
          %v2005 = vadd.f32 %v1985, %v1999
          %2006 = vst [vmem:[%s380] sm:$0xff] %v2003
          %2007 = vst [vmem:[%s380 + $0x8] sm:$0xff] %v2004
          %2008 = vst [vmem:[%s380 + $0x10] sm:$0xff] %v2005
        $region68: #{tpu_custom_call.1} parent=39 // pred_fallthru
          _
        %s2009 = sand.u32 %s173, 1
        %s2010 = scalar_lea.sflag [#allocation5], %s2009
        %s2011 = sand.u32 %s173, 1
        %s2012 = smul.addr %s2011, 24
        %s2013 = scalar_lea.vmem [#allocation12], %s2012
        // Predicated region
        $region69: #{tpu_custom_call.1} parent=39 // pred_check
          %p2014 = pneg %p183
        $region70: #{tpu_custom_call.1} parent=39 // pred_check_branch
          %2016 = sbr.rel (%p2014) target = $region72
        $region71: #{tpu_custom_call.1} parent=39 // pred_region
          %s2018 = ssub.s32 384, 384
          %2019 = vsyncadd %s2010, %s2018
          %s2020 = smul.addr %s32, 3
          %s2021 = smul.addr %s2020, 128
          %s2022 = scalar_lea.hbm %s5, %s2021
          %s2024 = sshll.u32 %s2013, 4
          %s2025 = int_to_ptr.vmem [resolvable:$true] %s2024
          %2027 = dma.vmem_to_hbm [thread:$0]  %s2025, 384, %s2022, %s2010
        $region72: #{tpu_custom_call.1} parent=39 // pred_fallthru
          _
      $region40: #{tpu_custom_call.1} parent=5 // pred_fallthru
        _
      %p2028 = scmp.le.s32.totalorder 2, %s23
      // Predicated region
      $region73: #{tpu_custom_call.1} parent=5 // pred_check
        %p2029 = pneg %p2028
      $region74: #{tpu_custom_call.1} parent=5 // pred_check_branch
        %2031 = sbr.rel (%p2029) target = $region76
      $region75: #{tpu_custom_call.1} parent=5 // pred_region
        %s2032 = ssub.s32 %s23, 2
        // Predicated region
        $region77: #{tpu_custom_call.1} parent=75 // pred_check
          %p2033 = pneg %p189
        $region78: #{tpu_custom_call.1} parent=75 // pred_check_branch
          %2035 = sbr.rel (%p2033) target = $region80
        $region79: #{tpu_custom_call.1} parent=75 // pred_region
          %s2036 = sand.u32 %s174, 1
          %s2037 = scalar_lea.sflag [#allocation5], %s2036
          %s2038 = sand.u32 %s174, 1
          %s2039 = smul.addr %s2038, 24
          %s2040 = scalar_lea.vmem [#allocation12], %s2039
          %2041 = dma.done %s2037, 384
        $region80: #{tpu_custom_call.1} parent=75 // pred_fallthru
          _
      $region76: #{tpu_custom_call.1} parent=5 // pred_fallthru
        _
    $region6: #{tpu_custom_call.1} parent=1 // loop_footer
      %s27 = sadd.s32 1, %s23
    $region7: #{tpu_custom_call.1} parent=1 // loop_footer_branch
      %22 = sbr.rel target = $region3
    $region8: #{tpu_custom_call.1} parent=1 // loop_exit
      _
    %2042 = vsyncpa [#allocation4], 1
    %s2043 = scalar_lea.sflag [#allocation4], 1
    %2044 = vsyncpa %s2043, 1
    %2045 = vsyncpa [#allocation7], 1
    %s2046 = scalar_lea.sflag [#allocation7], 1
    %2047 = vsyncpa %s2046, 1
    %2048 = vsyncpa [#allocation10], 1
    %s2049 = scalar_lea.sflag [#allocation10], 1
    %2050 = vsyncpa %s2049, 1
    %2051 = vsyncpa [#allocation5], 1
    %s2052 = scalar_lea.sflag [#allocation5], 1
    %2053 = vsyncpa %s2052, 1

</llo_original>
